<compile_context>
chip_gen: v5e
topology: v5e:2x2
jax: 0.10.0
libtpu: 0.0.40
codegen_flags: <defaults>
</compile_context>

<pallas_src>
import numpy as np
import jax
import jax.numpy as jnp
from jax import lax
from jax.experimental import pallas as pl
from jax.experimental.pallas import tpu as pltpu

# ----------------------------- constants --------------------------------- #
CHAR_PAD_LEN = 30
CHAR_EMBED_DIM = 8
N_CNN_FILTERS = 50
N_CNN_POS = sum(CHAR_EMBED_DIM - k + 1 for k in (3, 4, 5))   # 15 conv output positions
CNN_GROUP = 128                                              # filters padded 50 -> 128
GLOVE_DIM = 300
TURIAN_DIM = 50
WORD_DIM = GLOVE_DIM + TURIAN_DIM + N_CNN_FILTERS            # 400
LSTM_HIDDEN = 200
H_PAD = 256                                                  # lane-padded hidden
GATE_W = 2 * H_PAD                                           # 512: [fwd | bwd] per gate
LSTM_GI_W = 4 * GATE_W                                       # 2048: 4 gates * 2 dirs * 256
GI_DIM = 3 * (2 * LSTM_HIDDEN) + 20                          # 1220
PAIR_DIM = 3 * GI_DIM + 60                                   # 3720
FFNN_HIDDEN = 150
FFNN_HIDDEN_PAD = 256                                        # lane-padded hidden
FFNN_OUT_PAD = 128                                           # lane-dense output
BINS = [1, 2, 3, 4, 5, 8, 16, 32, 64]

ALPHABET = [chr(i) for i in range(32, 65)] + [chr(i) for i in range(91, 127)]
CHAR2ID = {c: i for i, c in enumerate(ALPHABET)}
N_CHARS = len(ALPHABET)                                      # 69


def _round_up(x, m):
    return ((x + m - 1) // m) * m


def _derive_vmem_limit():
    """Per-generation VMEM budget: physical capacity minus headroom, clamped."""
    cap = 128 * 1024 * 1024
    try:
        info = pltpu.get_tpu_info()
        cap = int(getattr(info, "vmem_capacity_bytes", cap) or cap)
    except Exception:
        pass
    # leave 16 MiB headroom for compiler temporaries / double-buffers
    return int(min(max(cap - 16 * 1024 * 1024, 32 * 1024 * 1024), 96 * 1024 * 1024))


VMEM_LIMIT = _derive_vmem_limit()


# ----------------------------- Pallas kernels ----------------------------- #
def ffnn_kernel(x_ref, w1_ref, b1_ref, w2_ref, b2_ref, w3_ref, b3_ref, o_ref):
    """3-layer MLP with ReLU. bf16 operands, f32 accumulation, lane-padded widths."""
    h = jnp.dot(x_ref[...], w1_ref[...],
                preferred_element_type=jnp.float32) + b1_ref[...]
    h = jnp.maximum(h, 0.0).astype(jnp.bfloat16)
    h = jnp.dot(h, w2_ref[...],
                preferred_element_type=jnp.float32) + b2_ref[...]
    h = jnp.maximum(h, 0.0).astype(jnp.bfloat16)
    o_ref[...] = jnp.dot(h, w3_ref[...],
                         preferred_element_type=jnp.float32) + b3_ref[...]


def char_cnn_kernel(x_ref, w_ref, b_ref, o_ref):
    """Character CNN via one im2col matmul: [tile,240] @ [240, 15*128].

    Columns are grouped per (kernel-size, position) into 128-lane groups
    (filters 0..49 valid, rest zero-padded); global max-pool = max over groups.
    """
    y = jnp.dot(x_ref[...], w_ref[...],
                preferred_element_type=jnp.float32) + b_ref[...]   # [tile, 15*128]
    m = y[:, 0:CNN_GROUP]
    for g in range(1, N_CNN_POS):                                  # lane-aligned slices
        m = jnp.maximum(m, y[:, g * CNN_GROUP:(g + 1) * CNN_GROUP])
    o_ref[...] = m


def lstm_kernel(gi_ref, whh_ref, o_ref, h_ref, c_ref):
    """Fused bidirectional LSTM recurrence over one (batch-tile, time-chunk) block.

    gi_ref : [T_CHUNK, B_TILE, 2048] packed (i,f,g,o) x (fwd|bwd) input projections (f32)
    whh_ref: [512, 2048]             block-structured recurrent weights (bf16)
    o_ref  : [T_CHUNK, B_TILE, 512]  hidden states, layout [h_fwd(256) | h_bwd(256)]
    h_ref/c_ref: [B_TILE, 512] f32 scratch, carried across time chunks (grid axis 1).

    One fused lane-aligned MXU dot per timestep replaces 4 misaligned per-gate
    dots; the hidden/cell carry stays in f32, only the MXU operand is cast.
    """
    @pl.when(pl.program_id(1) == 0)
    def _():
        h_ref[...] = jnp.zeros_like(h_ref)
        c_ref[...] = jnp.zeros_like(c_ref)

    n_t = gi_ref.shape[0]

    def step(t, carry):
        h, c = carry
        gates = gi_ref[t] + jnp.dot(h.astype(jnp.bfloat16), whh_ref[...],
                                    preferred_element_type=jnp.float32)  # [B,2048]
        i_g = jax.nn.sigmoid(gates[:, 0 * GATE_W:1 * GATE_W])
        f_g = jax.nn.sigmoid(gates[:, 1 * GATE_W:2 * GATE_W])
        g_g = jnp.tanh(gates[:, 2 * GATE_W:3 * GATE_W])
        o_g = jax.nn.sigmoid(gates[:, 3 * GATE_W:4 * GATE_W])
        c_new = f_g * c + i_g * g_g
        h_new = o_g * jnp.tanh(c_new)
        o_ref[t] = h_new
        return (h_new, c_new)

    h, c = lax.fori_loop(0, n_t, step, (h_ref[...], c_ref[...]), unroll=2)
    h_ref[...] = h
    c_ref[...] = c


def attn_pool_kernel(scores_ref, mask_ref, emb_ref, w_out_ref, pooled_ref):
    """Masked softmax over attention scores + weighted sum of word embeddings."""
    s = scores_ref[...]                              # [Bt, L]
    m = mask_ref[...]                                # [Bt, L] in {0,1}
    s = jnp.where(m > 0, s, -1e30)
    e = jnp.exp(s - jnp.max(s, axis=1, keepdims=True)) * m
    w = e / (jnp.sum(e, axis=1, keepdims=True) + 1e-30)   # epsilon only guards all-pad rows
    w_out_ref[...] = w
    # TODO(synk): could be a batched MXU dot_general; L and WORD_DIM are small so the
    # VPU broadcast-multiply + sublane reduce is adequate here.
    pooled_ref[...] = jnp.sum(w[:, :, None] * emb_ref[...], axis=1)   # [Bt, 400]


def masked_softmax_kernel(scores_ref, mask_ref, o_ref):
    """Row-wise softmax over valid entries; invalid positions get pad value 1000."""
    s = scores_ref[...]
    m = mask_ref[...]
    s = jnp.where(m > 0, s, -1e30)
    e = jnp.exp(s - jnp.max(s, axis=1, keepdims=True)) * m
    p = e / jnp.sum(e, axis=1, keepdims=True)
    o_ref[...] = jnp.where(m > 0, p, 1000.0)


# ----------------------------- kernel wrappers ----------------------------- #
def _full_spec(a):
    nd = a.ndim
    return pl.BlockSpec(a.shape, lambda i, _nd=nd: (0,) * _nd)


def ffnn_apply(params, name, x, tile=None):
    """x: [n, din] -> [n, dout]."""
    w1, b1 = params[f'{name}_w1p'], params[f'{name}_b1p']
    w2, b2 = params[f'{name}_w2p'], params[f'{name}_b2p']
    w3, b3 = params[f'{name}_w3p'], params[f'{name}_b3p']
    dout = params[f'{name}_dout']
    n, din = x.shape
    if tile is None:
        cap = 1024 if din <= 1536 else 512            # wide din -> smaller row tile
        tile = max(128, min(cap, _round_up(max(n, 1), 128)))
    n_pad = max(tile, _round_up(n, tile))
    xp = jnp.pad(x.astype(jnp.bfloat16), ((0, n_pad - n), (0, 0)))
    out = pl.pallas_call(
        ffnn_kernel,
        out_shape=jax.ShapeDtypeStruct((n_pad, FFNN_OUT_PAD), jnp.float32),
        grid=(n_pad // tile,),
        in_specs=[pl.BlockSpec((tile, din), lambda i: (i, 0)),
                  _full_spec(w1), _full_spec(b1),
                  _full_spec(w2), _full_spec(b2),
                  _full_spec(w3), _full_spec(b3)],
        out_specs=pl.BlockSpec((tile, FFNN_OUT_PAD), lambda i: (i, 0)),
        compiler_params=pltpu.CompilerParams(dimension_semantics=("parallel",),
                                             vmem_limit_bytes=VMEM_LIMIT),
    )(xp, w1, b1, w2, b2, w3, b3)
    return out[:n, :dout]


def char_cnn_apply(params, char_embedded):
    """char_embedded: [n, 30, 8] -> [n, 50]."""
    n = char_embedded.shape[0]
    tile = min(256, _round_up(max(n, 1), 8))
    n_pad = max(tile, _round_up(n, tile))
    x_flat = char_embedded.reshape(n, CHAR_PAD_LEN * CHAR_EMBED_DIM)
    xp = jnp.pad(x_flat, ((0, n_pad - n), (0, 0))).astype(jnp.bfloat16)
    w_all, b_all = params['cnn_w_all'], params['cnn_b_all']
    out = pl.pallas_call(
        char_cnn_kernel,
        out_shape=jax.ShapeDtypeStruct((n_pad, CNN_GROUP), jnp.float32),
        grid=(n_pad // tile,),
        in_specs=[pl.BlockSpec((tile, CHAR_PAD_LEN * CHAR_EMBED_DIM), lambda i: (i, 0)),
                  _full_spec(w_all), _full_spec(b_all)],
        out_specs=pl.BlockSpec((tile, CNN_GROUP), lambda i: (i, 0)),
        compiler_params=pltpu.CompilerParams(dimension_semantics=("parallel",),
                                             vmem_limit_bytes=VMEM_LIMIT),
    )(xp, w_all, b_all)
    return out[:n, :N_CNN_FILTERS]


def bilstm_apply(params, x_fwd_tm, x_bwd_tm):
    """x_*_tm: [L, B, 400] time-major (bwd already per-length reversed & masked).

    Returns (out_fwd, out_bwd_rev), each [L, B, H] f32.
    The input projection x @ W_ih + b is hoisted out of the recurrence; the
    recurrence itself runs both directions fused, batch-tiled and time-chunked.
    """
    L, B, _ = x_fwd_tm.shape
    H = LSTM_HIDDEN

    # ---- hoisted input projection (one big bf16 matmul per direction, via XLA) ----
    def proj(x_tm, d):
        wih = params[f'lstm_{d}_wih_bf16']                     # [400, 4H] bf16
        b = params[f'lstm_{d}_b']                              # [1, 4H] f32
        g = jnp.dot(x_tm.reshape(L * B, WORD_DIM).astype(jnp.bfloat16), wih,
                    preferred_element_type=jnp.float32) + b
        g = g.reshape(L, B, 4, H)
        return jnp.pad(g, ((0, 0), (0, 0), (0, 0), (0, H_PAD - H)))   # [L,B,4,256]

    gi = jnp.stack([proj(x_fwd_tm, 'fwd'), proj(x_bwd_tm, 'bwd')], axis=3)  # [L,B,4,2,256]
    gi = gi.reshape(L, B, LSTM_GI_W)                                        # [L,B,2048]

    # ---- batch tiling + time chunking (keeps VMEM bounded; v7x = 64 MiB safe) ----
    b_tile = min(128, _round_up(B, 8))
    b_pad = _round_up(B, b_tile)
    gi_row_bytes = b_tile * LSTM_GI_W * 4
    t_chunk = max(1, min(L, (12 * 1024 * 1024) // (2 * gi_row_bytes)))
    l_pad = _round_up(L, t_chunk)
    gi = jnp.pad(gi, ((0, l_pad - L), (0, b_pad - B), (0, 0)))

    out = pl.pallas_call(
        lstm_kernel,
        out_shape=jax.ShapeDtypeStruct((l_pad, b_pad, GATE_W), jnp.float32),
        grid=(b_pad // b_tile, l_pad // t_chunk),               # (parallel batch, serial time)
        in_specs=[pl.BlockSpec((t_chunk, b_tile, LSTM_GI_W), lambda b, t: (t, b, 0)),
                  pl.BlockSpec((GATE_W, LSTM_GI_W), lambda b, t: (0, 0))],
        out_specs=pl.BlockSpec((t_chunk, b_tile, GATE_W), lambda b, t: (t, b, 0)),
        scratch_shapes=[pltpu.VMEM((b_tile, GATE_W), jnp.float32),
                        pltpu.VMEM((b_tile, GATE_W), jnp.float32)],
        compiler_params=pltpu.CompilerParams(
            dimension_semantics=("parallel", "arbitrary"),
            vmem_limit_bytes=VMEM_LIMIT),
    )(gi, params['lstm_whh_packed'])

    out_fwd = out[:L, :B, 0:H]                                  # [L, B, 200]
    out_bwd_rev = out[:L, :B, H_PAD:H_PAD + H]                  # [L, B, 200]
    return out_fwd, out_bwd_rev


def attn_pool_apply(a_scores, mask, padded):
    """a_scores/mask: [B, L]; padded word embeds: [B, L, 400].  Tiled over B."""
    B, Lmax = a_scores.shape
    bt = min(128, _round_up(B, 8))
    b_pad = _round_up(B, bt)
    sc = jnp.pad(a_scores, ((0, b_pad - B), (0, 0)))
    mk = jnp.pad(mask, ((0, b_pad - B), (0, 0)))
    em = jnp.pad(padded, ((0, b_pad - B), (0, 0), (0, 0)))
    att, pooled = pl.pallas_call(
        attn_pool_kernel,
        out_shape=(jax.ShapeDtypeStruct((b_pad, Lmax), jnp.float32),
                   jax.ShapeDtypeStruct((b_pad, WORD_DIM), jnp.float32)),
        grid=(b_pad // bt,),
        in_specs=[pl.BlockSpec((bt, Lmax), lambda i: (i, 0)),
                  pl.BlockSpec((bt, Lmax), lambda i: (i, 0)),
                  pl.BlockSpec((bt, Lmax, WORD_DIM), lambda i: (i, 0, 0))],
        out_specs=(pl.BlockSpec((bt, Lmax), lambda i: (i, 0)),
                   pl.BlockSpec((bt, WORD_DIM), lambda i: (i, 0))),
        compiler_params=pltpu.CompilerParams(dimension_semantics=("parallel",),
                                             vmem_limit_bytes=VMEM_LIMIT),
    )(sc, mk, em)
    return att[:B], pooled[:B]


# ----------------------------- host-side helpers ----------------------------- #
class Span:
    def __init__(self, id, start, end, tokens, speaker):
        self.id = id
        self.start = start
        self.end = end
        self.tokens = tokens
        self.speaker = speaker
        self.s_m = None
        self.yi = []
        self.yi_idx = []
        self.att_weights = None


class Doc:
    def __init__(self, text, spans, genre):
        self.text = text
        self.spans = spans
        self.genre = genre


def speaker_label(s1, s2):
    return 1 if s1.speaker == s2.speaker else 2


def sort_out_crossing_spans(sorted_spans):
    non_overlapping = []
    for span_i in sorted_spans:
        taken = False
        for span_j in non_overlapping:
            if span_i.start < span_j.start <= span_i.end < span_j.end:
                taken = True
                break
            if span_j.start < span_i.start <= span_j.end < span_i.end:
                taken = True
                break
        if not taken:
            non_overlapping.append(span_i)
    return non_overlapping


def prune(spans, T, lbda=0.4):
    sorted_spans = sorted(spans, key=lambda s: s.s_m, reverse=True)
    non_crossing = sort_out_crossing_spans(sorted_spans)
    non_crossing = non_crossing[:int(T * lbda)]
    return sorted(non_crossing, key=lambda s: (s.start, s.end))


def dist_to_bin_id(dist):
    res = len(BINS) - 1
    for idx in range(len(BINS)):
        if idx < len(BINS) - 1:
            if BINS[idx] <= dist < BINS[idx + 1]:
                res = idx
                break
        else:
            res = idx
    return res


def word_to_char_ids(word, pad_len=CHAR_PAD_LEN):
    try:
        res = [CHAR2ID[ch] for ch in word]
    except KeyError:
        res = [0 for _ in word]
    res = res + (pad_len - len(res)) * [0]
    return res[:pad_len]


# ----------------------------- parameter init ----------------------------- #
def init_params(key, vocab_size):
    keys = iter(jax.random.split(key, 48))

    def nrm(shape, scale=0.05):
        return (scale * jax.random.normal(next(keys), shape)).astype(jnp.float32)

    p = {}
    p['glove'] = nrm((vocab_size, GLOVE_DIM), 0.1)
    p['turian'] = nrm((vocab_size, TURIAN_DIM), 0.1)
    char_emb = nrm((N_CHARS, CHAR_EMBED_DIM), 0.1)
    p['char_emb'] = char_emb.at[0].set(0.0)           # padding_idx=0
    for k in (3, 4, 5):
        p[f'conv{k}_w'] = nrm((k, CHAR_PAD_LEN, N_CNN_FILTERS))
        p[f'conv{k}_b'] = nrm((1, N_CNN_FILTERS))
    for d in ('fwd', 'bwd'):
        p[f'lstm_{d}_wih'] = nrm((WORD_DIM, 4 * LSTM_HIDDEN))
        p[f'lstm_{d}_whh'] = nrm((LSTM_HIDDEN, 4 * LSTM_HIDDEN))
        p[f'lstm_{d}_b'] = nrm((1, 4 * LSTM_HIDDEN))

    def ffnn_p(name, din, dout=1, h=FFNN_HIDDEN):
        p[f'{name}_w1'] = nrm((din, h)); p[f'{name}_b1'] = nrm((1, h))
        p[f'{name}_w2'] = nrm((h, h));   p[f'{name}_b2'] = nrm((1, h))
        p[f'{name}_w3'] = nrm((h, dout)); p[f'{name}_b3'] = nrm((1, dout))

    ffnn_p('ffnn_a', WORD_DIM)     # attention scorer (400 -> 1)
    ffnn_p('ffnn_m', GI_DIM)       # mention scorer   (1220 -> 1)
    ffnn_p('ffnn_s', PAIR_DIM)     # antecedent scorer(3720 -> 1)
    p['len_emb'] = nrm((10, 20), 0.1)
    p['dist_emb'] = nrm((len(BINS), 20), 0.1)
    p['genre_emb'] = nrm((7, 20), 0.1)
    p['speaker_emb'] = nrm((3, 20), 0.1)
    return p


def prepare_params(p):
    """Derive lane-padded / bf16 / im2col-packed weights used by the kernels."""
    q = dict(p)
    H = LSTM_HIDDEN

    # -- FFNNs: pad hidden 150->256, out 1->128, cast matmul weights to bf16 --
    # (zero padding is exact because padded biases are 0 and ReLU(0)=0)
    for name in ('ffnn_a', 'ffnn_m', 'ffnn_s'):
        w1 = np.asarray(p[f'{name}_w1']); b1 = np.asarray(p[f'{name}_b1'])
        w2 = np.asarray(p[f'{name}_w2']); b2 = np.asarray(p[f'{name}_b2'])
        w3 = np.asarray(p[f'{name}_w3']); b3 = np.asarray(p[f'{name}_b3'])
        din, h = w1.shape
        dout = w3.shape[1]
        w1p = np.zeros((din, FFNN_HIDDEN_PAD), np.float32); w1p[:, :h] = w1
        b1p = np.zeros((1, FFNN_HIDDEN_PAD), np.float32);   b1p[:, :h] = b1
        w2p = np.zeros((FFNN_HIDDEN_PAD, FFNN_HIDDEN_PAD), np.float32); w2p[:h, :h] = w2
        b2p = np.zeros((1, FFNN_HIDDEN_PAD), np.float32);   b2p[:, :h] = b2
        w3p = np.zeros((FFNN_HIDDEN_PAD, FFNN_OUT_PAD), np.float32); w3p[:h, :dout] = w3
        b3p = np.zeros((1, FFNN_OUT_PAD), np.float32);       b3p[:, :dout] = b3
        q[f'{name}_w1p'] = jnp.asarray(w1p).astype(jnp.bfloat16)
        q[f'{name}_b1p'] = jnp.asarray(b1p)
        q[f'{name}_w2p'] = jnp.asarray(w2p).astype(jnp.bfloat16)
        q[f'{name}_b2p'] = jnp.asarray(b2p)
        q[f'{name}_w3p'] = jnp.asarray(w3p).astype(jnp.bfloat16)
        q[f'{name}_b3p'] = jnp.asarray(b3p)
        q[f'{name}_dout'] = dout

    # -- char-CNN: pack all (kernel-size, position) taps into one [240, 15*128] matrix --
    W_all = np.zeros((CHAR_PAD_LEN * CHAR_EMBED_DIM, N_CNN_POS * CNN_GROUP), np.float32)
    b_all = np.zeros((1, N_CNN_POS * CNN_GROUP), np.float32)
    g = 0
    for k in (3, 4, 5):
        w = np.asarray(p[f'conv{k}_w'])   # [k, 30, 50]
        b = np.asarray(p[f'conv{k}_b'])   # [1, 50]
        for t in range(CHAR_EMBED_DIM - k + 1):
            for j in range(k):
                rows = np.arange(CHAR_PAD_LEN) * CHAR_EMBED_DIM + (t + j)     # c*8 + (t+j)
                cols = g * CNN_GROUP + np.arange(N_CNN_FILTERS)
                W_all[rows[:, None], cols[None, :]] += w[j]
            b_all[0, g * CNN_GROUP:g * CNN_GROUP + N_CNN_FILTERS] = b[0]
            g += 1
    q['cnn_w_all'] = jnp.asarray(W_all).astype(jnp.bfloat16)
    q['cnn_b_all'] = jnp.asarray(b_all)

    # -- LSTM: bf16 W_ih; fused block-structured W_hh [512, 2048] (bf16) --
    #    rows   0:256  = h_fwd (0:200 valid), 256:512 = h_bwd (256:456 valid)
    #    cols   per 512-block k: [gate_k fwd (0:256) | gate_k bwd (256:512)]
    for d in ('fwd', 'bwd'):
        q[f'lstm_{d}_wih_bf16'] = p[f'lstm_{d}_wih'].astype(jnp.bfloat16)
    whh_f = np.asarray(p['lstm_fwd_whh'])   # [200, 800]
    whh_b = np.asarray(p['lstm_bwd_whh'])   # [200, 800]
    W_pack = np.zeros((GATE_W, LSTM_GI_W), np.float32)
    for k in range(4):
        W_pack[0:H, k * GATE_W + 0:k * GATE_W + H] = whh_f[:, k * H:(k + 1) * H]
        W_pack[H_PAD:H_PAD + H, k * GATE_W + H_PAD:k * GATE_W + H_PAD + H] = \
            whh_b[:, k * H:(k + 1) * H]
    q['lstm_whh_packed'] = jnp.asarray(W_pack).astype(jnp.bfloat16)
    return q


# ----------------------------- full forward pass ----------------------------- #
def new_coref_forward(params, doc, vocab_stoi):
    # ---- Word_Vec_Cat: glove + turian + char-CNN  (dropout 0.5 -> identity, eval) ----
    span_tokens = [s.tokens for s in doc.spans]
    all_tokens = [t for toks in span_tokens for t in toks]
    vocab_ids = jnp.array([vocab_stoi.get(t, 0) for t in all_tokens], jnp.int32)
    char_ids = jnp.array([word_to_char_ids(t) for t in all_tokens], jnp.int32)     # [W, 30]
    char_embedded = jnp.take(params['char_emb'], char_ids, axis=0)                 # [W, 30, 8]
    char_feat = char_cnn_apply(params, char_embedded)                              # [W, 50]
    glove_out = jnp.take(params['glove'], vocab_ids, axis=0)                       # [W, 300]
    turian_out = jnp.take(params['turian'], vocab_ids, axis=0)                     # [W, 50]
    word_embeds = jnp.concatenate([glove_out, turian_out, char_feat], axis=1)      # [W, 400]

    lens = np.array([len(toks) for toks in span_tokens], np.int64)
    B, Lmax = len(span_tokens), int(lens.max())

    # single scatter instead of O(B) .at[].set dispatches
    batch_idx = np.concatenate([np.full(l, i, np.int32) for i, l in enumerate(lens)])
    pos_idx = np.concatenate([np.arange(l, dtype=np.int32) for l in lens])
    padded = jnp.zeros((B, Lmax, WORD_DIM), jnp.float32).at[
        jnp.asarray(batch_idx), jnp.asarray(pos_idx)].set(word_embeds)
    mask = jnp.asarray((np.arange(Lmax)[None, :] < lens[:, None]).astype(np.float32))

    # ---- Test_Encoder: BiLSTM (pack/pad emulated via per-length reversal) ----
    rev_idx_np = np.zeros((B, Lmax), np.int32)
    for i, l in enumerate(lens):
        rev_idx_np[i, :l] = np.arange(l)[::-1]
    rev_idx = jnp.asarray(rev_idx_np)
    bidx = jnp.arange(B)[:, None]

    padded_rev = padded[bidx, rev_idx] * mask[:, :, None]
    out_fwd_tm, out_bwd_rev_tm = bilstm_apply(
        params, jnp.transpose(padded, (1, 0, 2)), jnp.transpose(padded_rev, (1, 0, 2)))
    out_fwd = jnp.transpose(out_fwd_tm, (1, 0, 2)) * mask[:, :, None]
    out_bwd_rev = jnp.transpose(out_bwd_rev_tm, (1, 0, 2))
    out_bwd = out_bwd_rev[bidx, rev_idx] * mask[:, :, None]

    lstm_out = jnp.concatenate([out_fwd, out_bwd], axis=2)                         # [B, L, 400]
    lstm_first = lstm_out[:, 0, :]
    lstm_last = lstm_out[jnp.arange(B), jnp.asarray(lens - 1, jnp.int32)]          # [B, 400]

    # attention scores via FFNN_a, masked softmax + weighted avg of word embeds
    a_scores = ffnn_apply(params, 'ffnn_a', lstm_out.reshape(B * Lmax, 2 * LSTM_HIDDEN))
    a_scores = a_scores.reshape(B, Lmax)                                           # [B, L]
    att_soft, weighed = attn_pool_apply(a_scores, mask, padded)

    att_soft_np = np.asarray(att_soft)
    for i, s in enumerate(doc.spans):
        s.att_weights = att_soft_np[i, :lens[i]]
    # reference code returns the last span's raw ffnn_a scores as `a_t`
    att_weights = a_scores[B - 1, :int(lens[-1])].reshape(-1, 1)

    phi_i = jnp.take(params['len_emb'], jnp.asarray(lens, jnp.int32), axis=0)      # [B, 20]
    g_i = jnp.concatenate([lstm_first, lstm_last, weighed, phi_i], axis=1)         # [B, 1220]

    # ---- Mention_Scorer + pruning (host-side, data-dependent) ----
    s_m = ffnn_apply(params, 'ffnn_m', g_i)                                        # [B, 1]
    s_m_np = np.asarray(s_m).reshape(-1)
    for idx, s in enumerate(doc.spans):
        s.s_m = float(s_m_np[idx])
    # TODO(synk): span pruning / ragged per-span control flow is inherently
    # data-dependent host logic (span objects), kept in Python as in the reference.
    p_spans = prune(doc.spans, T=len(doc.text))
    for i, span_i in enumerate(p_spans):
        span_i.yi = p_spans[max(0, i - 250):i]
    s_m_vec = s_m.reshape(-1)

    # ---- Antecedent_Scorer (pair features assembled in bf16, no f32 round trip) ----
    pair_data = [(span_i.id, span_j.id, span_i.end - span_j.start, doc.genre,
                  speaker_label(span_i, span_j))
                 for span_i in p_spans for span_j in span_i.yi]
    mention_ids = jnp.array([p[0] for p in pair_data], jnp.int32)
    ante_ids = jnp.array([p[1] for p in pair_data], jnp.int32)
    dist_bins = jnp.array([dist_to_bin_id(p[2]) for p in pair_data], jnp.int32)
    genre_ids = jnp.array([p[3] for p in pair_data], jnp.int32)
    speaker_ids = jnp.array([p[4] for p in pair_data], jnp.int32)

    phi_ij = jnp.concatenate([jnp.take(params['dist_emb'], dist_bins, axis=0),
                              jnp.take(params['genre_emb'], genre_ids, axis=0),
                              jnp.take(params['speaker_emb'], speaker_ids, axis=0)],
                             axis=1).astype(jnp.bfloat16)
    g_i_bf = g_i.astype(jnp.bfloat16)
    vec_i = jnp.take(g_i_bf, mention_ids, axis=0)
    vec_j = jnp.take(g_i_bf, ante_ids, axis=0)
    sm_i = jnp.take(s_m_vec, mention_ids)
    sm_j = jnp.take(s_m_vec, ante_ids)
    # NOTE: reference module uses vec_j * vec_j (not vec_i * vec_j) — kept as-is.
    pair_feats = jnp.concatenate([vec_i, vec_j, vec_j * vec_j, phi_ij], axis=1)    # [P, 3720] bf16
    s_ij = ffnn_apply(params, 'ffnn_s', pair_feats).reshape(-1)
    coref_scores = sm_i + sm_j + s_ij                                              # [P]

    antecedent_idx = [len(s.yi) for s in p_spans if len(s.yi)]
    for span in p_spans:
        span.yi_idx = [s.id for s in span.yi]

    group_sizes = [0] + antecedent_idx                 # prepended empty tensor
    R = len(group_sizes)
    Cmax = max(gs + 1 for gs in group_sizes)           # +1 for epsilon
    row_idx = np.concatenate([np.full(gs, r, np.int32) for r, gs in enumerate(group_sizes)])
    col_idx = np.concatenate([np.arange(gs, dtype=np.int32) for gs in group_sizes])
    score_mat = jnp.zeros((R, Cmax), jnp.float32)      # epsilon entry stays 0.0
    if row_idx.size:
        score_mat = score_mat.at[jnp.asarray(row_idx), jnp.asarray(col_idx)].set(coref_scores)
    mask_np = (np.arange(Cmax)[None, :] < (np.array(group_sizes) + 1)[:, None]).astype(np.float32)
    probs = pl.pallas_call(
        masked_softmax_kernel,
        out_shape=jax.ShapeDtypeStruct((R, Cmax), jnp.float32),
    )(score_mat, jnp.asarray(mask_np))                 # padding value 1000, as in pad_sequence

    return p_spans, probs, att_weights


# ----------------------------- main ----------------------------- #
if __name__ == "__main__":
    text = ("the quick brown fox jumps over the lazy dog while a small cat "
            "watches from the old wooden fence near the river bank").split()
    vocab = sorted(set(text))
    vocab_stoi = {t: i for i, t in enumerate(vocab)}

    key = jax.random.PRNGKey(0)
    params = prepare_params(init_params(key, vocab_size=len(vocab)))

    spans_def = [(0, 3, "alice"), (2, 3, "alice"), (6, 8, "bob"),
                 (10, 13, "alice"), (15, 19, "bob")]
    spans = [Span(i, st, en, text[st:en + 1], spk)
             for i, (st, en, spk) in enumerate(spans_def)]
    doc = Doc(text, spans, genre=3)

    p_spans, probs, att_weights = new_coref_forward(params, doc, vocab_stoi)
    jax.block_until_ready(probs)
    jax.block_until_ready(att_weights)
    print("KERNEL_OK")
</pallas_src>

<mosaic_0001>
module attributes {stable_mosaic.version = 11 : i64} {
  func.func @char_cnn_kernel(%arg0: i32, %arg1: memref<24x240xbf16, #tpu.memory_space<vmem>>, %arg2: memref<240x1920xbf16, #tpu.memory_space<vmem>>, %arg3: memref<1x1920xf32, #tpu.memory_space<vmem>>, %arg4: memref<24x128xf32, #tpu.memory_space<vmem>>) attributes {dimension_semantics = [#tpu.dimension_semantics<parallel>], iteration_bounds = array<i64: 1>, scalar_prefetch = 0 : i64, scratch_operands = 0 : i64, tpu.core_type = #tpu.core_type<tc>, window_params = [{transform_indices = @transform_0, window_bounds = array<i64: 24, 240>}, {pipeline_mode = #tpu.pipeline_mode<synchronous>, transform_indices = @transform_1, window_bounds = array<i64: 240, 1920>}, {pipeline_mode = #tpu.pipeline_mode<synchronous>, transform_indices = @transform_2, window_bounds = array<i64: 1, 1920>}, {transform_indices = @transform_3, window_bounds = array<i64: 24, 128>}]} {
    %c0 = arith.constant 0 : index
    %c0_0 = arith.constant 0 : index
    %0 = vector.load %arg1[%c0, %c0_0] : memref<24x240xbf16, #tpu.memory_space<vmem>>, vector<24x240xbf16>
    %c0_1 = arith.constant 0 : index
    %c0_2 = arith.constant 0 : index
    %1 = vector.load %arg2[%c0_1, %c0_2] : memref<240x1920xbf16, #tpu.memory_space<vmem>>, vector<240x1920xbf16>
    %cst = arith.constant dense<0.000000e+00> : vector<24x1920xf32>
    %2 = tpu.matmul %0, %1, %cst {dimension_numbers = #tpu.dot_dimension_numbers<[1], [0], [0], [1], [0, 0, 1, 1], [], []>} : vector<24x240xbf16>, vector<240x1920xbf16>, vector<24x1920xf32> -> vector<24x1920xf32>
    %c0_3 = arith.constant 0 : index
    %c0_4 = arith.constant 0 : index
    %3 = vector.load %arg3[%c0_3, %c0_4] : memref<1x1920xf32, #tpu.memory_space<vmem>>, vector<1x1920xf32>
    %4 = vector.broadcast %3 : vector<1x1920xf32> to vector<24x1920xf32>
    %5 = arith.addf %2, %4 : vector<24x1920xf32>
    %6 = vector.extract_strided_slice %5 {offsets = [0, 0], sizes = [24, 128], strides = [1, 1]} : vector<24x1920xf32> to vector<24x128xf32>
    %7 = vector.extract_strided_slice %5 {offsets = [0, 128], sizes = [24, 128], strides = [1, 1]} : vector<24x1920xf32> to vector<24x128xf32>
    %8 = arith.maximumf %6, %7 : vector<24x128xf32>
    %9 = vector.extract_strided_slice %5 {offsets = [0, 256], sizes = [24, 128], strides = [1, 1]} : vector<24x1920xf32> to vector<24x128xf32>
    %10 = arith.maximumf %8, %9 : vector<24x128xf32>
    %11 = vector.extract_strided_slice %5 {offsets = [0, 384], sizes = [24, 128], strides = [1, 1]} : vector<24x1920xf32> to vector<24x128xf32>
    %12 = arith.maximumf %10, %11 : vector<24x128xf32>
    %13 = vector.extract_strided_slice %5 {offsets = [0, 512], sizes = [24, 128], strides = [1, 1]} : vector<24x1920xf32> to vector<24x128xf32>
    %14 = arith.maximumf %12, %13 : vector<24x128xf32>
    %15 = vector.extract_strided_slice %5 {offsets = [0, 640], sizes = [24, 128], strides = [1, 1]} : vector<24x1920xf32> to vector<24x128xf32>
    %16 = arith.maximumf %14, %15 : vector<24x128xf32>
    %17 = vector.extract_strided_slice %5 {offsets = [0, 768], sizes = [24, 128], strides = [1, 1]} : vector<24x1920xf32> to vector<24x128xf32>
    %18 = arith.maximumf %16, %17 : vector<24x128xf32>
    %19 = vector.extract_strided_slice %5 {offsets = [0, 896], sizes = [24, 128], strides = [1, 1]} : vector<24x1920xf32> to vector<24x128xf32>
    %20 = arith.maximumf %18, %19 : vector<24x128xf32>
    %21 = vector.extract_strided_slice %5 {offsets = [0, 1024], sizes = [24, 128], strides = [1, 1]} : vector<24x1920xf32> to vector<24x128xf32>
    %22 = arith.maximumf %20, %21 : vector<24x128xf32>
    %23 = vector.extract_strided_slice %5 {offsets = [0, 1152], sizes = [24, 128], strides = [1, 1]} : vector<24x1920xf32> to vector<24x128xf32>
    %24 = arith.maximumf %22, %23 : vector<24x128xf32>
    %25 = vector.extract_strided_slice %5 {offsets = [0, 1280], sizes = [24, 128], strides = [1, 1]} : vector<24x1920xf32> to vector<24x128xf32>
    %26 = arith.maximumf %24, %25 : vector<24x128xf32>
    %27 = vector.extract_strided_slice %5 {offsets = [0, 1408], sizes = [24, 128], strides = [1, 1]} : vector<24x1920xf32> to vector<24x128xf32>
    %28 = arith.maximumf %26, %27 : vector<24x128xf32>
    %29 = vector.extract_strided_slice %5 {offsets = [0, 1536], sizes = [24, 128], strides = [1, 1]} : vector<24x1920xf32> to vector<24x128xf32>
    %30 = arith.maximumf %28, %29 : vector<24x128xf32>
    %31 = vector.extract_strided_slice %5 {offsets = [0, 1664], sizes = [24, 128], strides = [1, 1]} : vector<24x1920xf32> to vector<24x128xf32>
    %32 = arith.maximumf %30, %31 : vector<24x128xf32>
    %33 = vector.extract_strided_slice %5 {offsets = [0, 1792], sizes = [24, 128], strides = [1, 1]} : vector<24x1920xf32> to vector<24x128xf32>
    %34 = arith.maximumf %32, %33 : vector<24x128xf32>
    %c0_5 = arith.constant 0 : index
    %c0_6 = arith.constant 0 : index
    %35 = vector.load %arg4[%c0_5, %c0_6] : memref<24x128xf32, #tpu.memory_space<vmem>>, vector<24x128xf32>
    tpu.vector_store %arg4[%c0_5, %c0_6], %34 {strides = array<i32>} : memref<24x128xf32, #tpu.memory_space<vmem>>, vector<24x128xf32>,
    return
  }
  func.func @transform_0(%arg0: i32) -> (i32, i32) {
    %c0_i32 = arith.constant 0 : i32
    %c0_i32_0 = arith.constant 0 : i32
    return %arg0, %c0_i32 : i32, i32
  }
  func.func @transform_1(%arg0: i32) -> (i32, i32) {
    %c0_i32 = arith.constant 0 : i32
    %c0_i32_0 = arith.constant 0 : i32
    %c0_i32_1 = arith.constant 0 : i32
    return %c0_i32, %c0_i32_0 : i32, i32
  }
  func.func @transform_2(%arg0: i32) -> (i32, i32) {
    %c0_i32 = arith.constant 0 : i32
    %c0_i32_0 = arith.constant 0 : i32
    %c0_i32_1 = arith.constant 0 : i32
    return %c0_i32, %c0_i32_0 : i32, i32
  }
  func.func @transform_3(%arg0: i32) -> (i32, i32) {
    %c0_i32 = arith.constant 0 : i32
    %c0_i32_0 = arith.constant 0 : i32
    return %arg0, %c0_i32 : i32, i32
  }
}

</mosaic_0001>

<llo_original>
// kernel: tpu_custom_call.1
$region0: #{tpu_custom_call.1}
  #allocation0 [shape = 'u32[]', space=smem, size = 0x4, offset = 0x4, fixed_abs, tag = 'smem constant byte address 0x4 - core index']
  #allocation1 [shape = 'u32[72,128]{1,0:T(1,128)}', space=vmem, size = 0x9000, scoped, tag = 'internal scratch']
  %s0 = inlined_call_operand.hbm [shape: bf16[24,240], index: 0, kind: input, shape index: {}]
  %s1 = inlined_call_operand.hbm [shape: bf16[240,1920], index: 1, kind: input, shape index: {}]
  %s2 = inlined_call_operand.hbm [shape: f32[1,1920], index: 2, kind: input, shape index: {}]
  %s3 = inlined_call_operand.hbm [shape: f32[24,128], index: 3, kind: output, shape index: {}]
  %s4 = sld [smem:[#allocation0]]
  $region34: #{tpu_custom_call.1} parent=0
    _
  %s6 = ssub.s32 1, %s4
  %s7 = scalar_select 0, %s6, %s4
  $region1: #{tpu_custom_call.1} parent=0
    #allocation2 [shape = 'u8[12288]{0}', space=vmem, size = 0x3000, scoped, tag = 'input window, operand 0, single buffered']
    #allocation3 [shape = 's32[1]{0}', space=sflag, size = 0x4, scoped, tag = 'scoped memory for tpu_custom_call.1']
    #allocation4 [shape = 's32[1]{0}', space=sflag, size = 0x4, scoped, tag = 'scoped memory for tpu_custom_call.1']
    #allocation5 [shape = 'u8[921600]{0}', space=vmem, size = 0xe1000, scoped, tag = 'input window, operand 1, single buffered']
    #allocation6 [shape = 's32[1]{0}', space=sflag, size = 0x4, scoped, tag = 'scoped memory for tpu_custom_call.1']
    #allocation7 [shape = 'u8[7680]{0}', space=vmem, size = 0x2000, scoped, tag = 'input window, operand 2, single buffered']
    #allocation8 [shape = 'u8[12288]{0}', space=vmem, size = 0x3000, scoped, tag = 'output window, operand 0, single buffered']
    %8 = vsyncpa [#allocation3], 0
    %9 = vsyncpa [#allocation6], 0
    %10 = vsyncpa [#allocation4], 0
    // Predicated region
    $region2: #{tpu_custom_call.1} parent=1 // pred_check
      _
    $region3: #{tpu_custom_call.1} parent=1 // pred_check_branch
      %12 = sbr.rel (0) target = $region5
    $region4: #{tpu_custom_call.1} parent=1 // pred_region
      %14 = vsyncadd [#allocation3], 0
      %s15 = sshll.u32 %s0, 4
      %s16 = int_to_ptr.hbm [resolvable:$true] %s15
      %s17 = sshll.u32 [#allocation2], 4
      %s18 = int_to_ptr.vmem [resolvable:$true] %s17
      %23 = dma.hbm_to_vmem [thread:$0]  %s16, 384, %s18, [#allocation3], 128, 128, 8
    $region5: #{tpu_custom_call.1} parent=1 // pred_fallthru
      _
    // Predicated region
    $region6: #{tpu_custom_call.1} parent=1 // pred_check
      _
    $region7: #{tpu_custom_call.1} parent=1 // pred_check_branch
      %25 = sbr.rel (0) target = $region9
    $region8: #{tpu_custom_call.1} parent=1 // pred_region
      %27 = vsyncadd [#allocation6], 0
      %s28 = sshll.u32 %s1, 4
      %s29 = int_to_ptr.hbm [resolvable:$true] %s28
      %s30 = sshll.u32 [#allocation5], 4
      %s31 = int_to_ptr.vmem [resolvable:$true] %s30
      %36 = dma.hbm_to_vmem [thread:$0]  %s29, 28800, %s31, [#allocation6], 960, 960, 60
    $region9: #{tpu_custom_call.1} parent=1 // pred_fallthru
      _
    // Predicated region
    $region10: #{tpu_custom_call.1} parent=1 // pred_check
      _
    $region11: #{tpu_custom_call.1} parent=1 // pred_check_branch
      %38 = sbr.rel (0) target = $region13
    $region12: #{tpu_custom_call.1} parent=1 // pred_region
      %40 = vsyncadd [#allocation6], 0
      %s42 = sshll.u32 %s2, 4
      %s43 = int_to_ptr.hbm [resolvable:$true] %s42
      %s44 = sshll.u32 [#allocation7], 4
      %s45 = int_to_ptr.vmem [resolvable:$true] %s44
      %47 = dma.hbm_to_vmem [thread:$0]  %s43, 240, %s45, [#allocation6]
    $region13: #{tpu_custom_call.1} parent=1 // pred_fallthru
      _
    // Predicated region
    $region14: #{tpu_custom_call.1} parent=1 // pred_check
      _
    $region15: #{tpu_custom_call.1} parent=1 // pred_check_branch
      %49 = sbr.rel (0) target = $region17
    $region16: #{tpu_custom_call.1} parent=1 // pred_region
      %51 = dma.done [#allocation3], 384
    $region17: #{tpu_custom_call.1} parent=1 // pred_fallthru
      _
    // Predicated region
    $region18: #{tpu_custom_call.1} parent=1 // pred_check
      _
    $region19: #{tpu_custom_call.1} parent=1 // pred_check_branch
      %53 = sbr.rel (0) target = $region21
    $region20: #{tpu_custom_call.1} parent=1 // pred_region
      %55 = dma.done [#allocation6], 28800
    $region21: #{tpu_custom_call.1} parent=1 // pred_fallthru
      _
    // Predicated region
    $region22: #{tpu_custom_call.1} parent=1 // pred_check
      _
    $region23: #{tpu_custom_call.1} parent=1 // pred_check_branch
      %57 = sbr.rel (0) target = $region25
    $region24: #{tpu_custom_call.1} parent=1 // pred_region
      %59 = dma.done [#allocation6], 240
    $region25: #{tpu_custom_call.1} parent=1 // pred_fallthru
      _
    %v61 = vld [vmem:[#allocation2] sm:$0xff]
    %v62 = vld [vmem:[#allocation2 + $0x8] sm:$0xff]
    %v63 = vld [vmem:[#allocation2 + $0x10] sm:$0xff]
    %v64 = vld [vmem:[#allocation5] sm:$0xff]
    %v65 = vld [vmem:[#allocation5 + $0x8] sm:$0xff]
    %v66 = vld [vmem:[#allocation5 + $0x10] sm:$0xff]
    %v67 = vld [vmem:[#allocation5 + $0x18] sm:$0xff]
    %v68 = vld [vmem:[#allocation5 + $0x20] sm:$0xff]
    %v69 = vld [vmem:[#allocation5 + $0x28] sm:$0xff]
    %v70 = vld [vmem:[#allocation5 + $0x30] sm:$0xff]
    %v71 = vld [vmem:[#allocation5 + $0x38] sm:$0xf]
    %v72 = vld [vmem:[#allocation5 + $0x3c] sm:$0xff]
    %v73 = vld [vmem:[#allocation5 + $0x44] sm:$0xff]
    %v74 = vld [vmem:[#allocation5 + $0x4c] sm:$0xff]
    %v75 = vld [vmem:[#allocation5 + $0x54] sm:$0xff]
    %v76 = vld [vmem:[#allocation5 + $0x5c] sm:$0xff]
    %v77 = vld [vmem:[#allocation5 + $0x64] sm:$0xff]
    %v78 = vld [vmem:[#allocation5 + $0x6c] sm:$0xff]
    %v79 = vld [vmem:[#allocation5 + $0x74] sm:$0xf]
    %v80 = vld [vmem:[#allocation5 + $0x78] sm:$0xff]
    %v81 = vld [vmem:[#allocation5 + $0x80] sm:$0xff]
    %v82 = vld [vmem:[#allocation5 + $0x88] sm:$0xff]
    %v83 = vld [vmem:[#allocation5 + $0x90] sm:$0xff]
    %v84 = vld [vmem:[#allocation5 + $0x98] sm:$0xff]
    %v85 = vld [vmem:[#allocation5 + $0xa0] sm:$0xff]
    %v86 = vld [vmem:[#allocation5 + $0xa8] sm:$0xff]
    %v87 = vld [vmem:[#allocation5 + $0xb0] sm:$0xf]
    %v88 = vld [vmem:[#allocation5 + $0xb4] sm:$0xff]
    %v89 = vld [vmem:[#allocation5 + $0xbc] sm:$0xff]
    %v90 = vld [vmem:[#allocation5 + $0xc4] sm:$0xff]
    %v91 = vld [vmem:[#allocation5 + $0xcc] sm:$0xff]
    %v92 = vld [vmem:[#allocation5 + $0xd4] sm:$0xff]
    %v93 = vld [vmem:[#allocation5 + $0xdc] sm:$0xff]
    %v94 = vld [vmem:[#allocation5 + $0xe4] sm:$0xff]
    %v95 = vld [vmem:[#allocation5 + $0xec] sm:$0xf]
    %v96 = vld [vmem:[#allocation5 + $0xf0] sm:$0xff]
    %v97 = vld [vmem:[#allocation5 + $0xf8] sm:$0xff]
    %v98 = vld [vmem:[#allocation5 + $0x100] sm:$0xff]
    %v99 = vld [vmem:[#allocation5 + $0x108] sm:$0xff]
    %v100 = vld [vmem:[#allocation5 + $0x110] sm:$0xff]
    %v101 = vld [vmem:[#allocation5 + $0x118] sm:$0xff]
    %v102 = vld [vmem:[#allocation5 + $0x120] sm:$0xff]
    %v103 = vld [vmem:[#allocation5 + $0x128] sm:$0xf]
    %v104 = vld [vmem:[#allocation5 + $0x12c] sm:$0xff]
    %v105 = vld [vmem:[#allocation5 + $0x134] sm:$0xff]
    %v106 = vld [vmem:[#allocation5 + $0x13c] sm:$0xff]
    %v107 = vld [vmem:[#allocation5 + $0x144] sm:$0xff]
    %v108 = vld [vmem:[#allocation5 + $0x14c] sm:$0xff]
    %v109 = vld [vmem:[#allocation5 + $0x154] sm:$0xff]
    %v110 = vld [vmem:[#allocation5 + $0x15c] sm:$0xff]
    %v111 = vld [vmem:[#allocation5 + $0x164] sm:$0xf]
    %v112 = vld [vmem:[#allocation5 + $0x168] sm:$0xff]
    %v113 = vld [vmem:[#allocation5 + $0x170] sm:$0xff]
    %v114 = vld [vmem:[#allocation5 + $0x178] sm:$0xff]
    %v115 = vld [vmem:[#allocation5 + $0x180] sm:$0xff]
    %v116 = vld [vmem:[#allocation5 + $0x188] sm:$0xff]
    %v117 = vld [vmem:[#allocation5 + $0x190] sm:$0xff]
    %v118 = vld [vmem:[#allocation5 + $0x198] sm:$0xff]
    %v119 = vld [vmem:[#allocation5 + $0x1a0] sm:$0xf]
    %v120 = vld [vmem:[#allocation5 + $0x1a4] sm:$0xff]
    %v121 = vld [vmem:[#allocation5 + $0x1ac] sm:$0xff]
    %v122 = vld [vmem:[#allocation5 + $0x1b4] sm:$0xff]
    %v123 = vld [vmem:[#allocation5 + $0x1bc] sm:$0xff]
    %v124 = vld [vmem:[#allocation5 + $0x1c4] sm:$0xff]
    %v125 = vld [vmem:[#allocation5 + $0x1cc] sm:$0xff]
    %v126 = vld [vmem:[#allocation5 + $0x1d4] sm:$0xff]
    %v127 = vld [vmem:[#allocation5 + $0x1dc] sm:$0xf]
    %v128 = vld [vmem:[#allocation5 + $0x1e0] sm:$0xff]
    %v129 = vld [vmem:[#allocation5 + $0x1e8] sm:$0xff]
    %v130 = vld [vmem:[#allocation5 + $0x1f0] sm:$0xff]
    %v131 = vld [vmem:[#allocation5 + $0x1f8] sm:$0xff]
    %v132 = vld [vmem:[#allocation5 + $0x200] sm:$0xff]
    %v133 = vld [vmem:[#allocation5 + $0x208] sm:$0xff]
    %v134 = vld [vmem:[#allocation5 + $0x210] sm:$0xff]
    %v135 = vld [vmem:[#allocation5 + $0x218] sm:$0xf]
    %v136 = vld [vmem:[#allocation5 + $0x21c] sm:$0xff]
    %v137 = vld [vmem:[#allocation5 + $0x224] sm:$0xff]
    %v138 = vld [vmem:[#allocation5 + $0x22c] sm:$0xff]
    %v139 = vld [vmem:[#allocation5 + $0x234] sm:$0xff]
    %v140 = vld [vmem:[#allocation5 + $0x23c] sm:$0xff]
    %v141 = vld [vmem:[#allocation5 + $0x244] sm:$0xff]
    %v142 = vld [vmem:[#allocation5 + $0x24c] sm:$0xff]
    %v143 = vld [vmem:[#allocation5 + $0x254] sm:$0xf]
    %v144 = vld [vmem:[#allocation5 + $0x258] sm:$0xff]
    %v145 = vld [vmem:[#allocation5 + $0x260] sm:$0xff]
    %v146 = vld [vmem:[#allocation5 + $0x268] sm:$0xff]
    %v147 = vld [vmem:[#allocation5 + $0x270] sm:$0xff]
    %v148 = vld [vmem:[#allocation5 + $0x278] sm:$0xff]
    %v149 = vld [vmem:[#allocation5 + $0x280] sm:$0xff]
    %v150 = vld [vmem:[#allocation5 + $0x288] sm:$0xff]
    %v151 = vld [vmem:[#allocation5 + $0x290] sm:$0xf]
    %v152 = vld [vmem:[#allocation5 + $0x294] sm:$0xff]
    %v153 = vld [vmem:[#allocation5 + $0x29c] sm:$0xff]
    %v154 = vld [vmem:[#allocation5 + $0x2a4] sm:$0xff]
    %v155 = vld [vmem:[#allocation5 + $0x2ac] sm:$0xff]
    %v156 = vld [vmem:[#allocation5 + $0x2b4] sm:$0xff]
    %v157 = vld [vmem:[#allocation5 + $0x2bc] sm:$0xff]
    %v158 = vld [vmem:[#allocation5 + $0x2c4] sm:$0xff]
    %v159 = vld [vmem:[#allocation5 + $0x2cc] sm:$0xf]
    %v160 = vld [vmem:[#allocation5 + $0x2d0] sm:$0xff]
    %v161 = vld [vmem:[#allocation5 + $0x2d8] sm:$0xff]
    %v162 = vld [vmem:[#allocation5 + $0x2e0] sm:$0xff]
    %v163 = vld [vmem:[#allocation5 + $0x2e8] sm:$0xff]
    %v164 = vld [vmem:[#allocation5 + $0x2f0] sm:$0xff]
    %v165 = vld [vmem:[#allocation5 + $0x2f8] sm:$0xff]
    %v166 = vld [vmem:[#allocation5 + $0x300] sm:$0xff]
    %v167 = vld [vmem:[#allocation5 + $0x308] sm:$0xf]
    %v168 = vld [vmem:[#allocation5 + $0x30c] sm:$0xff]
    %v169 = vld [vmem:[#allocation5 + $0x314] sm:$0xff]
    %v170 = vld [vmem:[#allocation5 + $0x31c] sm:$0xff]
    %v171 = vld [vmem:[#allocation5 + $0x324] sm:$0xff]
    %v172 = vld [vmem:[#allocation5 + $0x32c] sm:$0xff]
    %v173 = vld [vmem:[#allocation5 + $0x334] sm:$0xff]
    %v174 = vld [vmem:[#allocation5 + $0x33c] sm:$0xff]
    %v175 = vld [vmem:[#allocation5 + $0x344] sm:$0xf]
    %v176 = vld [vmem:[#allocation5 + $0x348] sm:$0xff]
    %v177 = vld [vmem:[#allocation5 + $0x350] sm:$0xff]
    %v178 = vld [vmem:[#allocation5 + $0x358] sm:$0xff]
    %v179 = vld [vmem:[#allocation5 + $0x360] sm:$0xff]
    %v180 = vld [vmem:[#allocation5 + $0x368] sm:$0xff]
    %v181 = vld [vmem:[#allocation5 + $0x370] sm:$0xff]
    %v182 = vld [vmem:[#allocation5 + $0x378] sm:$0xff]
    %v183 = vld [vmem:[#allocation5 + $0x380] sm:$0xf]
    %v184 = vld [vmem:[#allocation5 + $0x384] sm:$0xff]
    %v185 = vld [vmem:[#allocation5 + $0x38c] sm:$0xff]
    %v186 = vld [vmem:[#allocation5 + $0x394] sm:$0xff]
    %v187 = vld [vmem:[#allocation5 + $0x39c] sm:$0xff]
    %v188 = vld [vmem:[#allocation5 + $0x3a4] sm:$0xff]
    %v189 = vld [vmem:[#allocation5 + $0x3ac] sm:$0xff]
    %v190 = vld [vmem:[#allocation5 + $0x3b4] sm:$0xff]
    %v191 = vld [vmem:[#allocation5 + $0x3bc] sm:$0xf]
    %v192 = vld [vmem:[#allocation5 + $0x3c0] sm:$0xff]
    %v193 = vld [vmem:[#allocation5 + $0x3c8] sm:$0xff]
    %v194 = vld [vmem:[#allocation5 + $0x3d0] sm:$0xff]
    %v195 = vld [vmem:[#allocation5 + $0x3d8] sm:$0xff]
    %v196 = vld [vmem:[#allocation5 + $0x3e0] sm:$0xff]
    %v197 = vld [vmem:[#allocation5 + $0x3e8] sm:$0xff]
    %v198 = vld [vmem:[#allocation5 + $0x3f0] sm:$0xff]
    %v199 = vld [vmem:[#allocation5 + $0x3f8] sm:$0xf]
    %v200 = vld [vmem:[#allocation5 + $0x3fc] sm:$0xff]
    %v201 = vld [vmem:[#allocation5 + $0x404] sm:$0xff]
    %v202 = vld [vmem:[#allocation5 + $0x40c] sm:$0xff]
    %v203 = vld [vmem:[#allocation5 + $0x414] sm:$0xff]
    %v204 = vld [vmem:[#allocation5 + $0x41c] sm:$0xff]
    %v205 = vld [vmem:[#allocation5 + $0x424] sm:$0xff]
    %v206 = vld [vmem:[#allocation5 + $0x42c] sm:$0xff]
    %v207 = vld [vmem:[#allocation5 + $0x434] sm:$0xf]
    %v208 = vld [vmem:[#allocation5 + $0x438] sm:$0xff]
    %v209 = vld [vmem:[#allocation5 + $0x440] sm:$0xff]
    %v210 = vld [vmem:[#allocation5 + $0x448] sm:$0xff]
    %v211 = vld [vmem:[#allocation5 + $0x450] sm:$0xff]
    %v212 = vld [vmem:[#allocation5 + $0x458] sm:$0xff]
    %v213 = vld [vmem:[#allocation5 + $0x460] sm:$0xff]
    %v214 = vld [vmem:[#allocation5 + $0x468] sm:$0xff]
    %v215 = vld [vmem:[#allocation5 + $0x470] sm:$0xf]
    %v216 = vld [vmem:[#allocation5 + $0x474] sm:$0xff]
    %v217 = vld [vmem:[#allocation5 + $0x47c] sm:$0xff]
    %v218 = vld [vmem:[#allocation5 + $0x484] sm:$0xff]
    %v219 = vld [vmem:[#allocation5 + $0x48c] sm:$0xff]
    %v220 = vld [vmem:[#allocation5 + $0x494] sm:$0xff]
    %v221 = vld [vmem:[#allocation5 + $0x49c] sm:$0xff]
    %v222 = vld [vmem:[#allocation5 + $0x4a4] sm:$0xff]
    %v223 = vld [vmem:[#allocation5 + $0x4ac] sm:$0xf]
    %v224 = vld [vmem:[#allocation5 + $0x4b0] sm:$0xff]
    %v225 = vld [vmem:[#allocation5 + $0x4b8] sm:$0xff]
    %v226 = vld [vmem:[#allocation5 + $0x4c0] sm:$0xff]
    %v227 = vld [vmem:[#allocation5 + $0x4c8] sm:$0xff]
    %v228 = vld [vmem:[#allocation5 + $0x4d0] sm:$0xff]
    %v229 = vld [vmem:[#allocation5 + $0x4d8] sm:$0xff]
    %v230 = vld [vmem:[#allocation5 + $0x4e0] sm:$0xff]
    %v231 = vld [vmem:[#allocation5 + $0x4e8] sm:$0xf]
    %v232 = vld [vmem:[#allocation5 + $0x4ec] sm:$0xff]
    %v233 = vld [vmem:[#allocation5 + $0x4f4] sm:$0xff]
    %v234 = vld [vmem:[#allocation5 + $0x4fc] sm:$0xff]
    %v235 = vld [vmem:[#allocation5 + $0x504] sm:$0xff]
    %v236 = vld [vmem:[#allocation5 + $0x50c] sm:$0xff]
    %v237 = vld [vmem:[#allocation5 + $0x514] sm:$0xff]
    %v238 = vld [vmem:[#allocation5 + $0x51c] sm:$0xff]
    %v239 = vld [vmem:[#allocation5 + $0x524] sm:$0xf]
    %v240 = vld [vmem:[#allocation5 + $0x528] sm:$0xff]
    %v241 = vld [vmem:[#allocation5 + $0x530] sm:$0xff]
    %v242 = vld [vmem:[#allocation5 + $0x538] sm:$0xff]
    %v243 = vld [vmem:[#allocation5 + $0x540] sm:$0xff]
    %v244 = vld [vmem:[#allocation5 + $0x548] sm:$0xff]
    %v245 = vld [vmem:[#allocation5 + $0x550] sm:$0xff]
    %v246 = vld [vmem:[#allocation5 + $0x558] sm:$0xff]
    %v247 = vld [vmem:[#allocation5 + $0x560] sm:$0xf]
    %v248 = vld [vmem:[#allocation5 + $0x564] sm:$0xff]
    %v249 = vld [vmem:[#allocation5 + $0x56c] sm:$0xff]
    %v250 = vld [vmem:[#allocation5 + $0x574] sm:$0xff]
    %v251 = vld [vmem:[#allocation5 + $0x57c] sm:$0xff]
    %v252 = vld [vmem:[#allocation5 + $0x584] sm:$0xff]
    %v253 = vld [vmem:[#allocation5 + $0x58c] sm:$0xff]
    %v254 = vld [vmem:[#allocation5 + $0x594] sm:$0xff]
    %v255 = vld [vmem:[#allocation5 + $0x59c] sm:$0xf]
    %v256 = vld [vmem:[#allocation5 + $0x5a0] sm:$0xff]
    %v257 = vld [vmem:[#allocation5 + $0x5a8] sm:$0xff]
    %v258 = vld [vmem:[#allocation5 + $0x5b0] sm:$0xff]
    %v259 = vld [vmem:[#allocation5 + $0x5b8] sm:$0xff]
    %v260 = vld [vmem:[#allocation5 + $0x5c0] sm:$0xff]
    %v261 = vld [vmem:[#allocation5 + $0x5c8] sm:$0xff]
    %v262 = vld [vmem:[#allocation5 + $0x5d0] sm:$0xff]
    %v263 = vld [vmem:[#allocation5 + $0x5d8] sm:$0xf]
    %v264 = vld [vmem:[#allocation5 + $0x5dc] sm:$0xff]
    %v265 = vld [vmem:[#allocation5 + $0x5e4] sm:$0xff]
    %v266 = vld [vmem:[#allocation5 + $0x5ec] sm:$0xff]
    %v267 = vld [vmem:[#allocation5 + $0x5f4] sm:$0xff]
    %v268 = vld [vmem:[#allocation5 + $0x5fc] sm:$0xff]
    %v269 = vld [vmem:[#allocation5 + $0x604] sm:$0xff]
    %v270 = vld [vmem:[#allocation5 + $0x60c] sm:$0xff]
    %v271 = vld [vmem:[#allocation5 + $0x614] sm:$0xf]
    %v272 = vld [vmem:[#allocation5 + $0x618] sm:$0xff]
    %v273 = vld [vmem:[#allocation5 + $0x620] sm:$0xff]
    %v274 = vld [vmem:[#allocation5 + $0x628] sm:$0xff]
    %v275 = vld [vmem:[#allocation5 + $0x630] sm:$0xff]
    %v276 = vld [vmem:[#allocation5 + $0x638] sm:$0xff]
    %v277 = vld [vmem:[#allocation5 + $0x640] sm:$0xff]
    %v278 = vld [vmem:[#allocation5 + $0x648] sm:$0xff]
    %v279 = vld [vmem:[#allocation5 + $0x650] sm:$0xf]
    %v280 = vld [vmem:[#allocation5 + $0x654] sm:$0xff]
    %v281 = vld [vmem:[#allocation5 + $0x65c] sm:$0xff]
    %v282 = vld [vmem:[#allocation5 + $0x664] sm:$0xff]
    %v283 = vld [vmem:[#allocation5 + $0x66c] sm:$0xff]
    %v284 = vld [vmem:[#allocation5 + $0x674] sm:$0xff]
    %v285 = vld [vmem:[#allocation5 + $0x67c] sm:$0xff]
    %v286 = vld [vmem:[#allocation5 + $0x684] sm:$0xff]
    %v287 = vld [vmem:[#allocation5 + $0x68c] sm:$0xf]
    %v288 = vld [vmem:[#allocation5 + $0x690] sm:$0xff]
    %v289 = vld [vmem:[#allocation5 + $0x698] sm:$0xff]
    %v290 = vld [vmem:[#allocation5 + $0x6a0] sm:$0xff]
    %v291 = vld [vmem:[#allocation5 + $0x6a8] sm:$0xff]
    %v292 = vld [vmem:[#allocation5 + $0x6b0] sm:$0xff]
    %v293 = vld [vmem:[#allocation5 + $0x6b8] sm:$0xff]
    %v294 = vld [vmem:[#allocation5 + $0x6c0] sm:$0xff]
    %v295 = vld [vmem:[#allocation5 + $0x6c8] sm:$0xf]
    %v296 = vld [vmem:[#allocation5 + $0x6cc] sm:$0xff]
    %v297 = vld [vmem:[#allocation5 + $0x6d4] sm:$0xff]
    %v298 = vld [vmem:[#allocation5 + $0x6dc] sm:$0xff]
    %v299 = vld [vmem:[#allocation5 + $0x6e4] sm:$0xff]
    %v300 = vld [vmem:[#allocation5 + $0x6ec] sm:$0xff]
    %v301 = vld [vmem:[#allocation5 + $0x6f4] sm:$0xff]
    %v302 = vld [vmem:[#allocation5 + $0x6fc] sm:$0xff]
    %v303 = vld [vmem:[#allocation5 + $0x704] sm:$0xf]
    %v304 = vld [vmem:[#allocation7] sm:$0xff]
    %v305 = vld [vmem:[#allocation7 + $0x8] sm:$0xff]
    %v308 = vperm.slane %v304, 0
    %v309 = vperm.slane %v304, 1
    %v310 = vperm.slane %v304, 2
    %v311 = vperm.slane %v304, 3
    %v312 = vperm.slane %v304, 4
    %v313 = vperm.slane %v304, 5
    %v314 = vperm.slane %v304, 6
    %v315 = vperm.slane %v304, 7
    %v316 = vperm.slane %v305, 0
    %v317 = vperm.slane %v305, 1
    %v318 = vperm.slane %v305, 2
    %v319 = vperm.slane %v305, 3
    %v320 = vperm.slane %v305, 4
    %v321 = vperm.slane %v305, 5
    %v322 = vperm.slane %v305, 6
    %v341 = vunpack.c.l.b16 %v61
    %v342 = vunpack.c.h.b16 %v61
    %v343 = vunpack.c.l.b16 %v62
    %v344 = vunpack.c.h.b16 %v62
    %v345 = vunpack.c.l.b16 %v63
    %v346 = vunpack.c.h.b16 %v63
    %v347 = vpack.c.b16 %v343, %v341
    %v348 = vpack.c.b16 %v344, %v342
    %v349 = vpack.c.b16 %v345, %v345
    %v350 = vpack.c.b16 %v346, %v346
    %v593 = vunpack.c.l.b16 %v64
    %v594 = vunpack.c.h.b16 %v64
    %v595 = vunpack.c.l.b16 %v65
    %v596 = vunpack.c.h.b16 %v65
    %v597 = vunpack.c.l.b16 %v66
    %v598 = vunpack.c.h.b16 %v66
    %v599 = vunpack.c.l.b16 %v67
    %v600 = vunpack.c.h.b16 %v67
    %v601 = vunpack.c.l.b16 %v68
    %v602 = vunpack.c.h.b16 %v68
    %v603 = vunpack.c.l.b16 %v69
    %v604 = vunpack.c.h.b16 %v69
    %v605 = vunpack.c.l.b16 %v70
    %v606 = vunpack.c.h.b16 %v70
    %v607 = vunpack.c.l.b16 %v71
    %v608 = vunpack.c.l.b16 %v72
    %v609 = vunpack.c.h.b16 %v72
    %v610 = vunpack.c.l.b16 %v73
    %v611 = vunpack.c.h.b16 %v73
    %v612 = vunpack.c.l.b16 %v74
    %v613 = vunpack.c.h.b16 %v74
    %v614 = vunpack.c.l.b16 %v75
    %v615 = vunpack.c.h.b16 %v75
    %v616 = vunpack.c.l.b16 %v76
    %v617 = vunpack.c.h.b16 %v76
    %v618 = vunpack.c.l.b16 %v77
    %v619 = vunpack.c.h.b16 %v77
    %v620 = vunpack.c.l.b16 %v78
    %v621 = vunpack.c.h.b16 %v78
    %v622 = vunpack.c.l.b16 %v79
    %v623 = vunpack.c.l.b16 %v80
    %v624 = vunpack.c.h.b16 %v80
    %v625 = vunpack.c.l.b16 %v81
    %v626 = vunpack.c.h.b16 %v81
    %v627 = vunpack.c.l.b16 %v82
    %v628 = vunpack.c.h.b16 %v82
    %v629 = vunpack.c.l.b16 %v83
    %v630 = vunpack.c.h.b16 %v83
    %v631 = vunpack.c.l.b16 %v84
    %v632 = vunpack.c.h.b16 %v84
    %v633 = vunpack.c.l.b16 %v85
    %v634 = vunpack.c.h.b16 %v85
    %v635 = vunpack.c.l.b16 %v86
    %v636 = vunpack.c.h.b16 %v86
    %v637 = vunpack.c.l.b16 %v87
    %v638 = vunpack.c.l.b16 %v88
    %v639 = vunpack.c.h.b16 %v88
    %v640 = vunpack.c.l.b16 %v89
    %v641 = vunpack.c.h.b16 %v89
    %v642 = vunpack.c.l.b16 %v90
    %v643 = vunpack.c.h.b16 %v90
    %v644 = vunpack.c.l.b16 %v91
    %v645 = vunpack.c.h.b16 %v91
    %v646 = vunpack.c.l.b16 %v92
    %v647 = vunpack.c.h.b16 %v92
    %v648 = vunpack.c.l.b16 %v93
    %v649 = vunpack.c.h.b16 %v93
    %v650 = vunpack.c.l.b16 %v94
    %v651 = vunpack.c.h.b16 %v94
    %v652 = vunpack.c.l.b16 %v95
    %v653 = vunpack.c.l.b16 %v96
    %v654 = vunpack.c.h.b16 %v96
    %v655 = vunpack.c.l.b16 %v97
    %v656 = vunpack.c.h.b16 %v97
    %v657 = vunpack.c.l.b16 %v98
    %v658 = vunpack.c.h.b16 %v98
    %v659 = vunpack.c.l.b16 %v99
    %v660 = vunpack.c.h.b16 %v99
    %v661 = vunpack.c.l.b16 %v100
    %v662 = vunpack.c.h.b16 %v100
    %v663 = vunpack.c.l.b16 %v101
    %v664 = vunpack.c.h.b16 %v101
    %v665 = vunpack.c.l.b16 %v102
    %v666 = vunpack.c.h.b16 %v102
    %v667 = vunpack.c.l.b16 %v103
    %v668 = vunpack.c.l.b16 %v104
    %v669 = vunpack.c.h.b16 %v104
    %v670 = vunpack.c.l.b16 %v105
    %v671 = vunpack.c.h.b16 %v105
    %v672 = vunpack.c.l.b16 %v106
    %v673 = vunpack.c.h.b16 %v106
    %v674 = vunpack.c.l.b16 %v107
    %v675 = vunpack.c.h.b16 %v107
    %v676 = vunpack.c.l.b16 %v108
    %v677 = vunpack.c.h.b16 %v108
    %v678 = vunpack.c.l.b16 %v109
    %v679 = vunpack.c.h.b16 %v109
    %v680 = vunpack.c.l.b16 %v110
    %v681 = vunpack.c.h.b16 %v110
    %v682 = vunpack.c.l.b16 %v111
    %v683 = vunpack.c.l.b16 %v112
    %v684 = vunpack.c.h.b16 %v112
    %v685 = vunpack.c.l.b16 %v113
    %v686 = vunpack.c.h.b16 %v113
    %v687 = vunpack.c.l.b16 %v114
    %v688 = vunpack.c.h.b16 %v114
    %v689 = vunpack.c.l.b16 %v115
    %v690 = vunpack.c.h.b16 %v115
    %v691 = vunpack.c.l.b16 %v116
    %v692 = vunpack.c.h.b16 %v116
    %v693 = vunpack.c.l.b16 %v117
    %v694 = vunpack.c.h.b16 %v117
    %v695 = vunpack.c.l.b16 %v118
    %v696 = vunpack.c.h.b16 %v118
    %v697 = vunpack.c.l.b16 %v119
    %v698 = vunpack.c.l.b16 %v120
    %v699 = vunpack.c.h.b16 %v120
    %v700 = vunpack.c.l.b16 %v121
    %v701 = vunpack.c.h.b16 %v121
    %v702 = vunpack.c.l.b16 %v122
    %v703 = vunpack.c.h.b16 %v122
    %v704 = vunpack.c.l.b16 %v123
    %v705 = vunpack.c.h.b16 %v123
    %v706 = vunpack.c.l.b16 %v124
    %v707 = vunpack.c.h.b16 %v124
    %v708 = vunpack.c.l.b16 %v125
    %v709 = vunpack.c.h.b16 %v125
    %v710 = vunpack.c.l.b16 %v126
    %v711 = vunpack.c.h.b16 %v126
    %v712 = vunpack.c.l.b16 %v127
    %v713 = vunpack.c.l.b16 %v128
    %v714 = vunpack.c.h.b16 %v128
    %v715 = vunpack.c.l.b16 %v129
    %v716 = vunpack.c.h.b16 %v129
    %v717 = vunpack.c.l.b16 %v130
    %v718 = vunpack.c.h.b16 %v130
    %v719 = vunpack.c.l.b16 %v131
    %v720 = vunpack.c.h.b16 %v131
    %v721 = vunpack.c.l.b16 %v132
    %v722 = vunpack.c.h.b16 %v132
    %v723 = vunpack.c.l.b16 %v133
    %v724 = vunpack.c.h.b16 %v133
    %v725 = vunpack.c.l.b16 %v134
    %v726 = vunpack.c.h.b16 %v134
    %v727 = vunpack.c.l.b16 %v135
    %v728 = vunpack.c.l.b16 %v136
    %v729 = vunpack.c.h.b16 %v136
    %v730 = vunpack.c.l.b16 %v137
    %v731 = vunpack.c.h.b16 %v137
    %v732 = vunpack.c.l.b16 %v138
    %v733 = vunpack.c.h.b16 %v138
    %v734 = vunpack.c.l.b16 %v139
    %v735 = vunpack.c.h.b16 %v139
    %v736 = vunpack.c.l.b16 %v140
    %v737 = vunpack.c.h.b16 %v140
    %v738 = vunpack.c.l.b16 %v141
    %v739 = vunpack.c.h.b16 %v141
    %v740 = vunpack.c.l.b16 %v142
    %v741 = vunpack.c.h.b16 %v142
    %v742 = vunpack.c.l.b16 %v143
    %v743 = vunpack.c.l.b16 %v144
    %v744 = vunpack.c.h.b16 %v144
    %v745 = vunpack.c.l.b16 %v145
    %v746 = vunpack.c.h.b16 %v145
    %v747 = vunpack.c.l.b16 %v146
    %v748 = vunpack.c.h.b16 %v146
    %v749 = vunpack.c.l.b16 %v147
    %v750 = vunpack.c.h.b16 %v147
    %v751 = vunpack.c.l.b16 %v148
    %v752 = vunpack.c.h.b16 %v148
    %v753 = vunpack.c.l.b16 %v149
    %v754 = vunpack.c.h.b16 %v149
    %v755 = vunpack.c.l.b16 %v150
    %v756 = vunpack.c.h.b16 %v150
    %v757 = vunpack.c.l.b16 %v151
    %v758 = vunpack.c.l.b16 %v152
    %v759 = vunpack.c.h.b16 %v152
    %v760 = vunpack.c.l.b16 %v153
    %v761 = vunpack.c.h.b16 %v153
    %v762 = vunpack.c.l.b16 %v154
    %v763 = vunpack.c.h.b16 %v154
    %v764 = vunpack.c.l.b16 %v155
    %v765 = vunpack.c.h.b16 %v155
    %v766 = vunpack.c.l.b16 %v156
    %v767 = vunpack.c.h.b16 %v156
    %v768 = vunpack.c.l.b16 %v157
    %v769 = vunpack.c.h.b16 %v157
    %v770 = vunpack.c.l.b16 %v158
    %v771 = vunpack.c.h.b16 %v158
    %v772 = vunpack.c.l.b16 %v159
    %v773 = vunpack.c.l.b16 %v160
    %v774 = vunpack.c.h.b16 %v160
    %v775 = vunpack.c.l.b16 %v161
    %v776 = vunpack.c.h.b16 %v161
    %v777 = vunpack.c.l.b16 %v162
    %v778 = vunpack.c.h.b16 %v162
    %v779 = vunpack.c.l.b16 %v163
    %v780 = vunpack.c.h.b16 %v163
    %v781 = vunpack.c.l.b16 %v164
    %v782 = vunpack.c.h.b16 %v164
    %v783 = vunpack.c.l.b16 %v165
    %v784 = vunpack.c.h.b16 %v165
    %v785 = vunpack.c.l.b16 %v166
    %v786 = vunpack.c.h.b16 %v166
    %v787 = vunpack.c.l.b16 %v167
    %v788 = vunpack.c.l.b16 %v168
    %v789 = vunpack.c.h.b16 %v168
    %v790 = vunpack.c.l.b16 %v169
    %v791 = vunpack.c.h.b16 %v169
    %v792 = vunpack.c.l.b16 %v170
    %v793 = vunpack.c.h.b16 %v170
    %v794 = vunpack.c.l.b16 %v171
    %v795 = vunpack.c.h.b16 %v171
    %v796 = vunpack.c.l.b16 %v172
    %v797 = vunpack.c.h.b16 %v172
    %v798 = vunpack.c.l.b16 %v173
    %v799 = vunpack.c.h.b16 %v173
    %v800 = vunpack.c.l.b16 %v174
    %v801 = vunpack.c.h.b16 %v174
    %v802 = vunpack.c.l.b16 %v175
    %v803 = vunpack.c.l.b16 %v176
    %v804 = vunpack.c.h.b16 %v176
    %v805 = vunpack.c.l.b16 %v177
    %v806 = vunpack.c.h.b16 %v177
    %v807 = vunpack.c.l.b16 %v178
    %v808 = vunpack.c.h.b16 %v178
    %v809 = vunpack.c.l.b16 %v179
    %v810 = vunpack.c.h.b16 %v179
    %v811 = vunpack.c.l.b16 %v180
    %v812 = vunpack.c.h.b16 %v180
    %v813 = vunpack.c.l.b16 %v181
    %v814 = vunpack.c.h.b16 %v181
    %v815 = vunpack.c.l.b16 %v182
    %v816 = vunpack.c.h.b16 %v182
    %v817 = vunpack.c.l.b16 %v183
    %v818 = vunpack.c.l.b16 %v184
    %v819 = vunpack.c.h.b16 %v184
    %v820 = vunpack.c.l.b16 %v185
    %v821 = vunpack.c.h.b16 %v185
    %v822 = vunpack.c.l.b16 %v186
    %v823 = vunpack.c.h.b16 %v186
    %v824 = vunpack.c.l.b16 %v187
    %v825 = vunpack.c.h.b16 %v187
    %v826 = vunpack.c.l.b16 %v188
    %v827 = vunpack.c.h.b16 %v188
    %v828 = vunpack.c.l.b16 %v189
    %v829 = vunpack.c.h.b16 %v189
    %v830 = vunpack.c.l.b16 %v190
    %v831 = vunpack.c.h.b16 %v190
    %v832 = vunpack.c.l.b16 %v191
    %v833 = vunpack.c.l.b16 %v192
    %v834 = vunpack.c.h.b16 %v192
    %v835 = vunpack.c.l.b16 %v193
    %v836 = vunpack.c.h.b16 %v193
    %v837 = vunpack.c.l.b16 %v194
    %v838 = vunpack.c.h.b16 %v194
    %v839 = vunpack.c.l.b16 %v195
    %v840 = vunpack.c.h.b16 %v195
    %v841 = vunpack.c.l.b16 %v196
    %v842 = vunpack.c.h.b16 %v196
    %v843 = vunpack.c.l.b16 %v197
    %v844 = vunpack.c.h.b16 %v197
    %v845 = vunpack.c.l.b16 %v198
    %v846 = vunpack.c.h.b16 %v198
    %v847 = vunpack.c.l.b16 %v199
    %v848 = vunpack.c.l.b16 %v200
    %v849 = vunpack.c.h.b16 %v200
    %v850 = vunpack.c.l.b16 %v201
    %v851 = vunpack.c.h.b16 %v201
    %v852 = vunpack.c.l.b16 %v202
    %v853 = vunpack.c.h.b16 %v202
    %v854 = vunpack.c.l.b16 %v203
    %v855 = vunpack.c.h.b16 %v203
    %v856 = vunpack.c.l.b16 %v204
    %v857 = vunpack.c.h.b16 %v204
    %v858 = vunpack.c.l.b16 %v205
    %v859 = vunpack.c.h.b16 %v205
    %v860 = vunpack.c.l.b16 %v206
    %v861 = vunpack.c.h.b16 %v206
    %v862 = vunpack.c.l.b16 %v207
    %v863 = vunpack.c.l.b16 %v208
    %v864 = vunpack.c.h.b16 %v208
    %v865 = vunpack.c.l.b16 %v209
    %v866 = vunpack.c.h.b16 %v209
    %v867 = vunpack.c.l.b16 %v210
    %v868 = vunpack.c.h.b16 %v210
    %v869 = vunpack.c.l.b16 %v211
    %v870 = vunpack.c.h.b16 %v211
    %v871 = vunpack.c.l.b16 %v212
    %v872 = vunpack.c.h.b16 %v212
    %v873 = vunpack.c.l.b16 %v213
    %v874 = vunpack.c.h.b16 %v213
    %v875 = vunpack.c.l.b16 %v214
    %v876 = vunpack.c.h.b16 %v214
    %v877 = vunpack.c.l.b16 %v215
    %v878 = vunpack.c.l.b16 %v216
    %v879 = vunpack.c.h.b16 %v216
    %v880 = vunpack.c.l.b16 %v217
    %v881 = vunpack.c.h.b16 %v217
    %v882 = vunpack.c.l.b16 %v218
    %v883 = vunpack.c.h.b16 %v218
    %v884 = vunpack.c.l.b16 %v219
    %v885 = vunpack.c.h.b16 %v219
    %v886 = vunpack.c.l.b16 %v220
    %v887 = vunpack.c.h.b16 %v220
    %v888 = vunpack.c.l.b16 %v221
    %v889 = vunpack.c.h.b16 %v221
    %v890 = vunpack.c.l.b16 %v222
    %v891 = vunpack.c.h.b16 %v222
    %v892 = vunpack.c.l.b16 %v223
    %v893 = vunpack.c.l.b16 %v224
    %v894 = vunpack.c.h.b16 %v224
    %v895 = vunpack.c.l.b16 %v225
    %v896 = vunpack.c.h.b16 %v225
    %v897 = vunpack.c.l.b16 %v226
    %v898 = vunpack.c.h.b16 %v226
    %v899 = vunpack.c.l.b16 %v227
    %v900 = vunpack.c.h.b16 %v227
    %v901 = vunpack.c.l.b16 %v228
    %v902 = vunpack.c.h.b16 %v228
    %v903 = vunpack.c.l.b16 %v229
    %v904 = vunpack.c.h.b16 %v229
    %v905 = vunpack.c.l.b16 %v230
    %v906 = vunpack.c.h.b16 %v230
    %v907 = vunpack.c.l.b16 %v231
    %v908 = vunpack.c.l.b16 %v232
    %v909 = vunpack.c.h.b16 %v232
    %v910 = vunpack.c.l.b16 %v233
    %v911 = vunpack.c.h.b16 %v233
    %v912 = vunpack.c.l.b16 %v234
    %v913 = vunpack.c.h.b16 %v234
    %v914 = vunpack.c.l.b16 %v235
    %v915 = vunpack.c.h.b16 %v235
    %v916 = vunpack.c.l.b16 %v236
    %v917 = vunpack.c.h.b16 %v236
    %v918 = vunpack.c.l.b16 %v237
    %v919 = vunpack.c.h.b16 %v237
    %v920 = vunpack.c.l.b16 %v238
    %v921 = vunpack.c.h.b16 %v238
    %v922 = vunpack.c.l.b16 %v239
    %v923 = vunpack.c.l.b16 %v240
    %v924 = vunpack.c.h.b16 %v240
    %v925 = vunpack.c.l.b16 %v241
    %v926 = vunpack.c.h.b16 %v241
    %v927 = vunpack.c.l.b16 %v242
    %v928 = vunpack.c.h.b16 %v242
    %v929 = vunpack.c.l.b16 %v243
    %v930 = vunpack.c.h.b16 %v243
    %v931 = vunpack.c.l.b16 %v244
    %v932 = vunpack.c.h.b16 %v244
    %v933 = vunpack.c.l.b16 %v245
    %v934 = vunpack.c.h.b16 %v245
    %v935 = vunpack.c.l.b16 %v246
    %v936 = vunpack.c.h.b16 %v246
    %v937 = vunpack.c.l.b16 %v247
    %v938 = vunpack.c.l.b16 %v248
    %v939 = vunpack.c.h.b16 %v248
    %v940 = vunpack.c.l.b16 %v249
    %v941 = vunpack.c.h.b16 %v249
    %v942 = vunpack.c.l.b16 %v250
    %v943 = vunpack.c.h.b16 %v250
    %v944 = vunpack.c.l.b16 %v251
    %v945 = vunpack.c.h.b16 %v251
    %v946 = vunpack.c.l.b16 %v252
    %v947 = vunpack.c.h.b16 %v252
    %v948 = vunpack.c.l.b16 %v253
    %v949 = vunpack.c.h.b16 %v253
    %v950 = vunpack.c.l.b16 %v254
    %v951 = vunpack.c.h.b16 %v254
    %v952 = vunpack.c.l.b16 %v255
    %v953 = vunpack.c.l.b16 %v256
    %v954 = vunpack.c.h.b16 %v256
    %v955 = vunpack.c.l.b16 %v257
    %v956 = vunpack.c.h.b16 %v257
    %v957 = vunpack.c.l.b16 %v258
    %v958 = vunpack.c.h.b16 %v258
    %v959 = vunpack.c.l.b16 %v259
    %v960 = vunpack.c.h.b16 %v259
    %v961 = vunpack.c.l.b16 %v260
    %v962 = vunpack.c.h.b16 %v260
    %v963 = vunpack.c.l.b16 %v261
    %v964 = vunpack.c.h.b16 %v261
    %v965 = vunpack.c.l.b16 %v262
    %v966 = vunpack.c.h.b16 %v262
    %v967 = vunpack.c.l.b16 %v263
    %v968 = vunpack.c.l.b16 %v264
    %v969 = vunpack.c.h.b16 %v264
    %v970 = vunpack.c.l.b16 %v265
    %v971 = vunpack.c.h.b16 %v265
    %v972 = vunpack.c.l.b16 %v266
    %v973 = vunpack.c.h.b16 %v266
    %v974 = vunpack.c.l.b16 %v267
    %v975 = vunpack.c.h.b16 %v267
    %v976 = vunpack.c.l.b16 %v268
    %v977 = vunpack.c.h.b16 %v268
    %v978 = vunpack.c.l.b16 %v269
    %v979 = vunpack.c.h.b16 %v269
    %v980 = vunpack.c.l.b16 %v270
    %v981 = vunpack.c.h.b16 %v270
    %v982 = vunpack.c.l.b16 %v271
    %v983 = vunpack.c.l.b16 %v272
    %v984 = vunpack.c.h.b16 %v272
    %v985 = vunpack.c.l.b16 %v273
    %v986 = vunpack.c.h.b16 %v273
    %v987 = vunpack.c.l.b16 %v274
    %v988 = vunpack.c.h.b16 %v274
    %v989 = vunpack.c.l.b16 %v275
    %v990 = vunpack.c.h.b16 %v275
    %v991 = vunpack.c.l.b16 %v276
    %v992 = vunpack.c.h.b16 %v276
    %v993 = vunpack.c.l.b16 %v277
    %v994 = vunpack.c.h.b16 %v277
    %v995 = vunpack.c.l.b16 %v278
    %v996 = vunpack.c.h.b16 %v278
    %v997 = vunpack.c.l.b16 %v279
    %v998 = vunpack.c.l.b16 %v280
    %v999 = vunpack.c.h.b16 %v280
    %v1000 = vunpack.c.l.b16 %v281
    %v1001 = vunpack.c.h.b16 %v281
    %v1002 = vunpack.c.l.b16 %v282
    %v1003 = vunpack.c.h.b16 %v282
    %v1004 = vunpack.c.l.b16 %v283
    %v1005 = vunpack.c.h.b16 %v283
    %v1006 = vunpack.c.l.b16 %v284
    %v1007 = vunpack.c.h.b16 %v284
    %v1008 = vunpack.c.l.b16 %v285
    %v1009 = vunpack.c.h.b16 %v285
    %v1010 = vunpack.c.l.b16 %v286
    %v1011 = vunpack.c.h.b16 %v286
    %v1012 = vunpack.c.l.b16 %v287
    %v1013 = vunpack.c.l.b16 %v288
    %v1014 = vunpack.c.h.b16 %v288
    %v1015 = vunpack.c.l.b16 %v289
    %v1016 = vunpack.c.h.b16 %v289
    %v1017 = vunpack.c.l.b16 %v290
    %v1018 = vunpack.c.h.b16 %v290
    %v1019 = vunpack.c.l.b16 %v291
    %v1020 = vunpack.c.h.b16 %v291
    %v1021 = vunpack.c.l.b16 %v292
    %v1022 = vunpack.c.h.b16 %v292
    %v1023 = vunpack.c.l.b16 %v293
    %v1024 = vunpack.c.h.b16 %v293
    %v1025 = vunpack.c.l.b16 %v294
    %v1026 = vunpack.c.h.b16 %v294
    %v1027 = vunpack.c.l.b16 %v295
    %v1028 = vunpack.c.l.b16 %v296
    %v1029 = vunpack.c.h.b16 %v296
    %v1030 = vunpack.c.l.b16 %v297
    %v1031 = vunpack.c.h.b16 %v297
    %v1032 = vunpack.c.l.b16 %v298
    %v1033 = vunpack.c.h.b16 %v298
    %v1034 = vunpack.c.l.b16 %v299
    %v1035 = vunpack.c.h.b16 %v299
    %v1036 = vunpack.c.l.b16 %v300
    %v1037 = vunpack.c.h.b16 %v300
    %v1038 = vunpack.c.l.b16 %v301
    %v1039 = vunpack.c.h.b16 %v301
    %v1040 = vunpack.c.l.b16 %v302
    %v1041 = vunpack.c.h.b16 %v302
    %v1042 = vunpack.c.l.b16 %v303
    %v1043 = vpack.c.b16 %v608, %v593
    %v1044 = vpack.c.b16 %v609, %v594
    %v1045 = vpack.c.b16 %v610, %v595
    %v1046 = vpack.c.b16 %v611, %v596
    %v1047 = vpack.c.b16 %v612, %v597
    %v1048 = vpack.c.b16 %v613, %v598
    %v1049 = vpack.c.b16 %v614, %v599
    %v1050 = vpack.c.b16 %v615, %v600
    %v1051 = vpack.c.b16 %v616, %v601
    %v1052 = vpack.c.b16 %v617, %v602
    %v1053 = vpack.c.b16 %v618, %v603
    %v1054 = vpack.c.b16 %v619, %v604
    %v1055 = vpack.c.b16 %v620, %v605
    %v1056 = vpack.c.b16 %v621, %v606
    %v1057 = vpack.c.b16 %v622, %v607
    %v1058 = vpack.c.b16 %v638, %v623
    %v1059 = vpack.c.b16 %v639, %v624
    %v1060 = vpack.c.b16 %v640, %v625
    %v1061 = vpack.c.b16 %v641, %v626
    %v1062 = vpack.c.b16 %v642, %v627
    %v1063 = vpack.c.b16 %v643, %v628
    %v1064 = vpack.c.b16 %v644, %v629
    %v1065 = vpack.c.b16 %v645, %v630
    %v1066 = vpack.c.b16 %v646, %v631
    %v1067 = vpack.c.b16 %v647, %v632
    %v1068 = vpack.c.b16 %v648, %v633
    %v1069 = vpack.c.b16 %v649, %v634
    %v1070 = vpack.c.b16 %v650, %v635
    %v1071 = vpack.c.b16 %v651, %v636
    %v1072 = vpack.c.b16 %v652, %v637
    %v1073 = vpack.c.b16 %v668, %v653
    %v1074 = vpack.c.b16 %v669, %v654
    %v1075 = vpack.c.b16 %v670, %v655
    %v1076 = vpack.c.b16 %v671, %v656
    %v1077 = vpack.c.b16 %v672, %v657
    %v1078 = vpack.c.b16 %v673, %v658
    %v1079 = vpack.c.b16 %v674, %v659
    %v1080 = vpack.c.b16 %v675, %v660
    %v1081 = vpack.c.b16 %v676, %v661
    %v1082 = vpack.c.b16 %v677, %v662
    %v1083 = vpack.c.b16 %v678, %v663
    %v1084 = vpack.c.b16 %v679, %v664
    %v1085 = vpack.c.b16 %v680, %v665
    %v1086 = vpack.c.b16 %v681, %v666
    %v1087 = vpack.c.b16 %v682, %v667
    %v1088 = vpack.c.b16 %v698, %v683
    %v1089 = vpack.c.b16 %v699, %v684
    %v1090 = vpack.c.b16 %v700, %v685
    %v1091 = vpack.c.b16 %v701, %v686
    %v1092 = vpack.c.b16 %v702, %v687
    %v1093 = vpack.c.b16 %v703, %v688
    %v1094 = vpack.c.b16 %v704, %v689
    %v1095 = vpack.c.b16 %v705, %v690
    %v1096 = vpack.c.b16 %v706, %v691
    %v1097 = vpack.c.b16 %v707, %v692
    %v1098 = vpack.c.b16 %v708, %v693
    %v1099 = vpack.c.b16 %v709, %v694
    %v1100 = vpack.c.b16 %v710, %v695
    %v1101 = vpack.c.b16 %v711, %v696
    %v1102 = vpack.c.b16 %v712, %v697
    %v1103 = vpack.c.b16 %v728, %v713
    %v1104 = vpack.c.b16 %v729, %v714
    %v1105 = vpack.c.b16 %v730, %v715
    %v1106 = vpack.c.b16 %v731, %v716
    %v1107 = vpack.c.b16 %v732, %v717
    %v1108 = vpack.c.b16 %v733, %v718
    %v1109 = vpack.c.b16 %v734, %v719
    %v1110 = vpack.c.b16 %v735, %v720
    %v1111 = vpack.c.b16 %v736, %v721
    %v1112 = vpack.c.b16 %v737, %v722
    %v1113 = vpack.c.b16 %v738, %v723
    %v1114 = vpack.c.b16 %v739, %v724
    %v1115 = vpack.c.b16 %v740, %v725
    %v1116 = vpack.c.b16 %v741, %v726
    %v1117 = vpack.c.b16 %v742, %v727
    %v1118 = vpack.c.b16 %v758, %v743
    %v1119 = vpack.c.b16 %v759, %v744
    %v1120 = vpack.c.b16 %v760, %v745
    %v1121 = vpack.c.b16 %v761, %v746
    %v1122 = vpack.c.b16 %v762, %v747
    %v1123 = vpack.c.b16 %v763, %v748
    %v1124 = vpack.c.b16 %v764, %v749
    %v1125 = vpack.c.b16 %v765, %v750
    %v1126 = vpack.c.b16 %v766, %v751
    %v1127 = vpack.c.b16 %v767, %v752
    %v1128 = vpack.c.b16 %v768, %v753
    %v1129 = vpack.c.b16 %v769, %v754
    %v1130 = vpack.c.b16 %v770, %v755
    %v1131 = vpack.c.b16 %v771, %v756
    %v1132 = vpack.c.b16 %v772, %v757
    %v1133 = vpack.c.b16 %v788, %v773
    %v1134 = vpack.c.b16 %v789, %v774
    %v1135 = vpack.c.b16 %v790, %v775
    %v1136 = vpack.c.b16 %v791, %v776
    %v1137 = vpack.c.b16 %v792, %v777
    %v1138 = vpack.c.b16 %v793, %v778
    %v1139 = vpack.c.b16 %v794, %v779
    %v1140 = vpack.c.b16 %v795, %v780
    %v1141 = vpack.c.b16 %v796, %v781
    %v1142 = vpack.c.b16 %v797, %v782
    %v1143 = vpack.c.b16 %v798, %v783
    %v1144 = vpack.c.b16 %v799, %v784
    %v1145 = vpack.c.b16 %v800, %v785
    %v1146 = vpack.c.b16 %v801, %v786
    %v1147 = vpack.c.b16 %v802, %v787
    %v1148 = vpack.c.b16 %v818, %v803
    %v1149 = vpack.c.b16 %v819, %v804
    %v1150 = vpack.c.b16 %v820, %v805
    %v1151 = vpack.c.b16 %v821, %v806
    %v1152 = vpack.c.b16 %v822, %v807
    %v1153 = vpack.c.b16 %v823, %v808
    %v1154 = vpack.c.b16 %v824, %v809
    %v1155 = vpack.c.b16 %v825, %v810
    %v1156 = vpack.c.b16 %v826, %v811
    %v1157 = vpack.c.b16 %v827, %v812
    %v1158 = vpack.c.b16 %v828, %v813
    %v1159 = vpack.c.b16 %v829, %v814
    %v1160 = vpack.c.b16 %v830, %v815
    %v1161 = vpack.c.b16 %v831, %v816
    %v1162 = vpack.c.b16 %v832, %v817
    %v1163 = vpack.c.b16 %v848, %v833
    %v1164 = vpack.c.b16 %v849, %v834
    %v1165 = vpack.c.b16 %v850, %v835
    %v1166 = vpack.c.b16 %v851, %v836
    %v1167 = vpack.c.b16 %v852, %v837
    %v1168 = vpack.c.b16 %v853, %v838
    %v1169 = vpack.c.b16 %v854, %v839
    %v1170 = vpack.c.b16 %v855, %v840
    %v1171 = vpack.c.b16 %v856, %v841
    %v1172 = vpack.c.b16 %v857, %v842
    %v1173 = vpack.c.b16 %v858, %v843
    %v1174 = vpack.c.b16 %v859, %v844
    %v1175 = vpack.c.b16 %v860, %v845
    %v1176 = vpack.c.b16 %v861, %v846
    %v1177 = vpack.c.b16 %v862, %v847
    %v1178 = vpack.c.b16 %v878, %v863
    %v1179 = vpack.c.b16 %v879, %v864
    %v1180 = vpack.c.b16 %v880, %v865
    %v1181 = vpack.c.b16 %v881, %v866
    %v1182 = vpack.c.b16 %v882, %v867
    %v1183 = vpack.c.b16 %v883, %v868
    %v1184 = vpack.c.b16 %v884, %v869
    %v1185 = vpack.c.b16 %v885, %v870
    %v1186 = vpack.c.b16 %v886, %v871
    %v1187 = vpack.c.b16 %v887, %v872
    %v1188 = vpack.c.b16 %v888, %v873
    %v1189 = vpack.c.b16 %v889, %v874
    %v1190 = vpack.c.b16 %v890, %v875
    %v1191 = vpack.c.b16 %v891, %v876
    %v1192 = vpack.c.b16 %v892, %v877
    %v1193 = vpack.c.b16 %v908, %v893
    %v1194 = vpack.c.b16 %v909, %v894
    %v1195 = vpack.c.b16 %v910, %v895
    %v1196 = vpack.c.b16 %v911, %v896
    %v1197 = vpack.c.b16 %v912, %v897
    %v1198 = vpack.c.b16 %v913, %v898
    %v1199 = vpack.c.b16 %v914, %v899
    %v1200 = vpack.c.b16 %v915, %v900
    %v1201 = vpack.c.b16 %v916, %v901
    %v1202 = vpack.c.b16 %v917, %v902
    %v1203 = vpack.c.b16 %v918, %v903
    %v1204 = vpack.c.b16 %v919, %v904
    %v1205 = vpack.c.b16 %v920, %v905
    %v1206 = vpack.c.b16 %v921, %v906
    %v1207 = vpack.c.b16 %v922, %v907
    %v1208 = vpack.c.b16 %v938, %v923
    %v1209 = vpack.c.b16 %v939, %v924
    %v1210 = vpack.c.b16 %v940, %v925
    %v1211 = vpack.c.b16 %v941, %v926
    %v1212 = vpack.c.b16 %v942, %v927
    %v1213 = vpack.c.b16 %v943, %v928
    %v1214 = vpack.c.b16 %v944, %v929
    %v1215 = vpack.c.b16 %v945, %v930
    %v1216 = vpack.c.b16 %v946, %v931
    %v1217 = vpack.c.b16 %v947, %v932
    %v1218 = vpack.c.b16 %v948, %v933
    %v1219 = vpack.c.b16 %v949, %v934
    %v1220 = vpack.c.b16 %v950, %v935
    %v1221 = vpack.c.b16 %v951, %v936
    %v1222 = vpack.c.b16 %v952, %v937
    %v1223 = vpack.c.b16 %v968, %v953
    %v1224 = vpack.c.b16 %v969, %v954
    %v1225 = vpack.c.b16 %v970, %v955
    %v1226 = vpack.c.b16 %v971, %v956
    %v1227 = vpack.c.b16 %v972, %v957
    %v1228 = vpack.c.b16 %v973, %v958
    %v1229 = vpack.c.b16 %v974, %v959
    %v1230 = vpack.c.b16 %v975, %v960
    %v1231 = vpack.c.b16 %v976, %v961
    %v1232 = vpack.c.b16 %v977, %v962
    %v1233 = vpack.c.b16 %v978, %v963
    %v1234 = vpack.c.b16 %v979, %v964
    %v1235 = vpack.c.b16 %v980, %v965
    %v1236 = vpack.c.b16 %v981, %v966
    %v1237 = vpack.c.b16 %v982, %v967
    %v1238 = vpack.c.b16 %v998, %v983
    %v1239 = vpack.c.b16 %v999, %v984
    %v1240 = vpack.c.b16 %v1000, %v985
    %v1241 = vpack.c.b16 %v1001, %v986
    %v1242 = vpack.c.b16 %v1002, %v987
    %v1243 = vpack.c.b16 %v1003, %v988
    %v1244 = vpack.c.b16 %v1004, %v989
    %v1245 = vpack.c.b16 %v1005, %v990
    %v1246 = vpack.c.b16 %v1006, %v991
    %v1247 = vpack.c.b16 %v1007, %v992
    %v1248 = vpack.c.b16 %v1008, %v993
    %v1249 = vpack.c.b16 %v1009, %v994
    %v1250 = vpack.c.b16 %v1010, %v995
    %v1251 = vpack.c.b16 %v1011, %v996
    %v1252 = vpack.c.b16 %v1012, %v997
    %v1253 = vpack.c.b16 %v1028, %v1013
    %v1254 = vpack.c.b16 %v1029, %v1014
    %v1255 = vpack.c.b16 %v1030, %v1015
    %v1256 = vpack.c.b16 %v1031, %v1016
    %v1257 = vpack.c.b16 %v1032, %v1017
    %v1258 = vpack.c.b16 %v1033, %v1018
    %v1259 = vpack.c.b16 %v1034, %v1019
    %v1260 = vpack.c.b16 %v1035, %v1020
    %v1261 = vpack.c.b16 %v1036, %v1021
    %v1262 = vpack.c.b16 %v1037, %v1022
    %v1263 = vpack.c.b16 %v1038, %v1023
    %v1264 = vpack.c.b16 %v1039, %v1024
    %v1265 = vpack.c.b16 %v1040, %v1025
    %v1266 = vpack.c.b16 %v1041, %v1026
    %v1267 = vpack.c.b16 %v1042, %v1027
    %vm1493 = vcmask 916480
    %v1495 = vsel %vm1493, %v348, 0
    %v1498 = vsel %vm1493, %v350, 0
    %1500 = vmatpush.bf16.msra.mxu0 %v1148
    %1501 = vmatpush.bf16.msra.mxu0 %v1133
    %1502 = vmatpush.bf16.msra.mxu0 %v1118
    %1503 = vmatpush.bf16.msra.mxu0 %v1103
    %1504 = vmatpush.bf16.msra.mxu0 %v1088
    %1505 = vmatpush.bf16.msra.mxu0 %v1073
    %1506 = vmatpush.bf16.msra.mxu0 %v1058
    %1507 = vmatpush.bf16.msra.mxu0 %v1043
    %1508 = vmatmul.bf16.gmra.mxu0 %v347
    %v1509 = vpop.f32.mrf.mxu0
    %v1510 = vadd.f32 %v308, %v1509
    %v1511 = vpop.f32.mrf.mxu0
    %v1512 = vadd.f32 %v308, %v1511
    %1513 = vmatmul.bf16.gmra.mxu0 %v349
    %v1514 = vpop.f32.mrf.mxu0
    %v1515 = vadd.f32 %v308, %v1514
    %v1516 = vpop.f32.mrf.mxu0
    %1517 = vdwg.mxu0
    %1518 = vmatpush.bf16.msra.mxu0 0
    %1519 = vmatpush.bf16.msra.mxu0 %v1253
    %1520 = vmatpush.bf16.msra.mxu0 %v1238
    %1521 = vmatpush.bf16.msra.mxu0 %v1223
    %1522 = vmatpush.bf16.msra.mxu0 %v1208
    %1523 = vmatpush.bf16.msra.mxu0 %v1193
    %1524 = vmatpush.bf16.msra.mxu0 %v1178
    %1525 = vmatpush.bf16.msra.mxu0 %v1163
    %1526 = vmatmul.bf16.gmra.mxu0 %v1495
    %v1527 = vpop.f32.mrf.mxu0
    %v1528 = vadd.f32 %v1510, %v1527
    %v1529 = vpop.f32.mrf.mxu0
    %v1530 = vadd.f32 %v1512, %v1529
    %1531 = vmatmul.bf16.gmra.mxu0 %v1498
    %v1532 = vpop.f32.mrf.mxu0
    %v1533 = vadd.f32 %v1515, %v1532
    %v1534 = vpop.f32.mrf.mxu0
    %1535 = vdwg.mxu0
    %1536 = vmatpush.bf16.msra.mxu0 %v1149
    %1537 = vmatpush.bf16.msra.mxu0 %v1134
    %1538 = vmatpush.bf16.msra.mxu0 %v1119
    %1539 = vmatpush.bf16.msra.mxu0 %v1104
    %1540 = vmatpush.bf16.msra.mxu0 %v1089
    %1541 = vmatpush.bf16.msra.mxu0 %v1074
    %1542 = vmatpush.bf16.msra.mxu0 %v1059
    %1543 = vmatpush.bf16.msra.mxu0 %v1044
    %1544 = vmatmul.bf16.gmra.mxu0 %v347
    %v1545 = vpop.f32.mrf.mxu0
    %v1546 = vadd.f32 %v309, %v1545
    %v1547 = vpop.f32.mrf.mxu0
    %v1548 = vadd.f32 %v309, %v1547
    %1549 = vmatmul.bf16.gmra.mxu0 %v349
    %v1550 = vpop.f32.mrf.mxu0
    %v1551 = vadd.f32 %v309, %v1550
    %v1552 = vpop.f32.mrf.mxu0
    %1553 = vdwg.mxu0
    %1554 = vmatpush.bf16.msra.mxu0 0
    %1555 = vmatpush.bf16.msra.mxu0 %v1254
    %1556 = vmatpush.bf16.msra.mxu0 %v1239
    %1557 = vmatpush.bf16.msra.mxu0 %v1224
    %1558 = vmatpush.bf16.msra.mxu0 %v1209
    %1559 = vmatpush.bf16.msra.mxu0 %v1194
    %1560 = vmatpush.bf16.msra.mxu0 %v1179
    %1561 = vmatpush.bf16.msra.mxu0 %v1164
    %1562 = vmatmul.bf16.gmra.mxu0 %v1495
    %v1563 = vpop.f32.mrf.mxu0
    %v1564 = vadd.f32 %v1546, %v1563
    %v1565 = vpop.f32.mrf.mxu0
    %v1566 = vadd.f32 %v1548, %v1565
    %1567 = vmatmul.bf16.gmra.mxu0 %v1498
    %v1568 = vpop.f32.mrf.mxu0
    %v1569 = vadd.f32 %v1551, %v1568
    %v1570 = vpop.f32.mrf.mxu0
    %1571 = vdwg.mxu0
    %1572 = vmatpush.bf16.msra.mxu0 %v1150
    %1573 = vmatpush.bf16.msra.mxu0 %v1135
    %1574 = vmatpush.bf16.msra.mxu0 %v1120
    %1575 = vmatpush.bf16.msra.mxu0 %v1105
    %1576 = vmatpush.bf16.msra.mxu0 %v1090
    %1577 = vmatpush.bf16.msra.mxu0 %v1075
    %1578 = vmatpush.bf16.msra.mxu0 %v1060
    %1579 = vmatpush.bf16.msra.mxu0 %v1045
    %1580 = vmatmul.bf16.gmra.mxu0 %v347
    %v1581 = vpop.f32.mrf.mxu0
    %v1582 = vadd.f32 %v310, %v1581
    %v1583 = vpop.f32.mrf.mxu0
    %v1584 = vadd.f32 %v310, %v1583
    %1585 = vmatmul.bf16.gmra.mxu0 %v349
    %v1586 = vpop.f32.mrf.mxu0
    %v1587 = vadd.f32 %v310, %v1586
    %v1588 = vpop.f32.mrf.mxu0
    %1589 = vdwg.mxu0
    %1590 = vmatpush.bf16.msra.mxu0 0
    %1591 = vmatpush.bf16.msra.mxu0 %v1255
    %1592 = vmatpush.bf16.msra.mxu0 %v1240
    %1593 = vmatpush.bf16.msra.mxu0 %v1225
    %1594 = vmatpush.bf16.msra.mxu0 %v1210
    %1595 = vmatpush.bf16.msra.mxu0 %v1195
    %1596 = vmatpush.bf16.msra.mxu0 %v1180
    %1597 = vmatpush.bf16.msra.mxu0 %v1165
    %1598 = vmatmul.bf16.gmra.mxu0 %v1495
    %v1599 = vpop.f32.mrf.mxu0
    %v1600 = vadd.f32 %v1582, %v1599
    %v1601 = vpop.f32.mrf.mxu0
    %v1602 = vadd.f32 %v1584, %v1601
    %1603 = vmatmul.bf16.gmra.mxu0 %v1498
    %v1604 = vpop.f32.mrf.mxu0
    %v1605 = vadd.f32 %v1587, %v1604
    %v1606 = vpop.f32.mrf.mxu0
    %1607 = vdwg.mxu0
    %1608 = vmatpush.bf16.msra.mxu0 %v1151
    %1609 = vmatpush.bf16.msra.mxu0 %v1136
    %1610 = vmatpush.bf16.msra.mxu0 %v1121
    %1611 = vmatpush.bf16.msra.mxu0 %v1106
    %1612 = vmatpush.bf16.msra.mxu0 %v1091
    %1613 = vmatpush.bf16.msra.mxu0 %v1076
    %1614 = vmatpush.bf16.msra.mxu0 %v1061
    %1615 = vmatpush.bf16.msra.mxu0 %v1046
    %1616 = vmatmul.bf16.gmra.mxu0 %v347
    %v1617 = vpop.f32.mrf.mxu0
    %v1618 = vadd.f32 %v311, %v1617
    %v1619 = vpop.f32.mrf.mxu0
    %v1620 = vadd.f32 %v311, %v1619
    %1621 = vmatmul.bf16.gmra.mxu0 %v349
    %v1622 = vpop.f32.mrf.mxu0
    %v1623 = vadd.f32 %v311, %v1622
    %v1624 = vpop.f32.mrf.mxu0
    %1625 = vdwg.mxu0
    %1626 = vmatpush.bf16.msra.mxu0 0
    %1627 = vmatpush.bf16.msra.mxu0 %v1256
    %1628 = vmatpush.bf16.msra.mxu0 %v1241
    %1629 = vmatpush.bf16.msra.mxu0 %v1226
    %1630 = vmatpush.bf16.msra.mxu0 %v1211
    %1631 = vmatpush.bf16.msra.mxu0 %v1196
    %1632 = vmatpush.bf16.msra.mxu0 %v1181
    %1633 = vmatpush.bf16.msra.mxu0 %v1166
    %1634 = vmatmul.bf16.gmra.mxu0 %v1495
    %v1635 = vpop.f32.mrf.mxu0
    %v1636 = vadd.f32 %v1618, %v1635
    %v1637 = vpop.f32.mrf.mxu0
    %v1638 = vadd.f32 %v1620, %v1637
    %1639 = vmatmul.bf16.gmra.mxu0 %v1498
    %v1640 = vpop.f32.mrf.mxu0
    %v1641 = vadd.f32 %v1623, %v1640
    %v1642 = vpop.f32.mrf.mxu0
    %1643 = vdwg.mxu0
    %1644 = vmatpush.bf16.msra.mxu0 %v1152
    %1645 = vmatpush.bf16.msra.mxu0 %v1137
    %1646 = vmatpush.bf16.msra.mxu0 %v1122
    %1647 = vmatpush.bf16.msra.mxu0 %v1107
    %1648 = vmatpush.bf16.msra.mxu0 %v1092
    %1649 = vmatpush.bf16.msra.mxu0 %v1077
    %1650 = vmatpush.bf16.msra.mxu0 %v1062
    %1651 = vmatpush.bf16.msra.mxu0 %v1047
    %1652 = vmatmul.bf16.gmra.mxu0 %v347
    %v1653 = vpop.f32.mrf.mxu0
    %v1654 = vadd.f32 %v312, %v1653
    %v1655 = vpop.f32.mrf.mxu0
    %v1656 = vadd.f32 %v312, %v1655
    %1657 = vmatmul.bf16.gmra.mxu0 %v349
    %v1658 = vpop.f32.mrf.mxu0
    %v1659 = vadd.f32 %v312, %v1658
    %v1660 = vpop.f32.mrf.mxu0
    %1661 = vdwg.mxu0
    %1662 = vmatpush.bf16.msra.mxu0 0
    %1663 = vmatpush.bf16.msra.mxu0 %v1257
    %1664 = vmatpush.bf16.msra.mxu0 %v1242
    %1665 = vmatpush.bf16.msra.mxu0 %v1227
    %1666 = vmatpush.bf16.msra.mxu0 %v1212
    %1667 = vmatpush.bf16.msra.mxu0 %v1197
    %1668 = vmatpush.bf16.msra.mxu0 %v1182
    %1669 = vmatpush.bf16.msra.mxu0 %v1167
    %1670 = vmatmul.bf16.gmra.mxu0 %v1495
    %v1671 = vpop.f32.mrf.mxu0
    %v1672 = vadd.f32 %v1654, %v1671
    %v1673 = vpop.f32.mrf.mxu0
    %v1674 = vadd.f32 %v1656, %v1673
    %1675 = vmatmul.bf16.gmra.mxu0 %v1498
    %v1676 = vpop.f32.mrf.mxu0
    %v1677 = vadd.f32 %v1659, %v1676
    %v1678 = vpop.f32.mrf.mxu0
    %1679 = vdwg.mxu0
    %1680 = vmatpush.bf16.msra.mxu0 %v1153
    %1681 = vmatpush.bf16.msra.mxu0 %v1138
    %1682 = vmatpush.bf16.msra.mxu0 %v1123
    %1683 = vmatpush.bf16.msra.mxu0 %v1108
    %1684 = vmatpush.bf16.msra.mxu0 %v1093
    %1685 = vmatpush.bf16.msra.mxu0 %v1078
    %1686 = vmatpush.bf16.msra.mxu0 %v1063
    %1687 = vmatpush.bf16.msra.mxu0 %v1048
    %1688 = vmatmul.bf16.gmra.mxu0 %v347
    %v1689 = vpop.f32.mrf.mxu0
    %v1690 = vadd.f32 %v313, %v1689
    %v1691 = vpop.f32.mrf.mxu0
    %v1692 = vadd.f32 %v313, %v1691
    %1693 = vmatmul.bf16.gmra.mxu0 %v349
    %v1694 = vpop.f32.mrf.mxu0
    %v1695 = vadd.f32 %v313, %v1694
    %v1696 = vpop.f32.mrf.mxu0
    %1697 = vdwg.mxu0
    %1698 = vmatpush.bf16.msra.mxu0 0
    %1699 = vmatpush.bf16.msra.mxu0 %v1258
    %1700 = vmatpush.bf16.msra.mxu0 %v1243
    %1701 = vmatpush.bf16.msra.mxu0 %v1228
    %1702 = vmatpush.bf16.msra.mxu0 %v1213
    %1703 = vmatpush.bf16.msra.mxu0 %v1198
    %1704 = vmatpush.bf16.msra.mxu0 %v1183
    %1705 = vmatpush.bf16.msra.mxu0 %v1168
    %1706 = vmatmul.bf16.gmra.mxu0 %v1495
    %v1707 = vpop.f32.mrf.mxu0
    %v1708 = vadd.f32 %v1690, %v1707
    %v1709 = vpop.f32.mrf.mxu0
    %v1710 = vadd.f32 %v1692, %v1709
    %1711 = vmatmul.bf16.gmra.mxu0 %v1498
    %v1712 = vpop.f32.mrf.mxu0
    %v1713 = vadd.f32 %v1695, %v1712
    %v1714 = vpop.f32.mrf.mxu0
    %1715 = vdwg.mxu0
    %1716 = vmatpush.bf16.msra.mxu0 %v1154
    %1717 = vmatpush.bf16.msra.mxu0 %v1139
    %1718 = vmatpush.bf16.msra.mxu0 %v1124
    %1719 = vmatpush.bf16.msra.mxu0 %v1109
    %1720 = vmatpush.bf16.msra.mxu0 %v1094
    %1721 = vmatpush.bf16.msra.mxu0 %v1079
    %1722 = vmatpush.bf16.msra.mxu0 %v1064
    %1723 = vmatpush.bf16.msra.mxu0 %v1049
    %1724 = vmatmul.bf16.gmra.mxu0 %v347
    %v1725 = vpop.f32.mrf.mxu0
    %v1726 = vadd.f32 %v314, %v1725
    %v1727 = vpop.f32.mrf.mxu0
    %v1728 = vadd.f32 %v314, %v1727
    %1729 = vmatmul.bf16.gmra.mxu0 %v349
    %v1730 = vpop.f32.mrf.mxu0
    %v1731 = vadd.f32 %v314, %v1730
    %v1732 = vpop.f32.mrf.mxu0
    %1733 = vdwg.mxu0
    %1734 = vmatpush.bf16.msra.mxu0 0
    %1735 = vmatpush.bf16.msra.mxu0 %v1259
    %1736 = vmatpush.bf16.msra.mxu0 %v1244
    %1737 = vmatpush.bf16.msra.mxu0 %v1229
    %1738 = vmatpush.bf16.msra.mxu0 %v1214
    %1739 = vmatpush.bf16.msra.mxu0 %v1199
    %1740 = vmatpush.bf16.msra.mxu0 %v1184
    %1741 = vmatpush.bf16.msra.mxu0 %v1169
    %1742 = vmatmul.bf16.gmra.mxu0 %v1495
    %v1743 = vpop.f32.mrf.mxu0
    %v1744 = vadd.f32 %v1726, %v1743
    %v1745 = vpop.f32.mrf.mxu0
    %v1746 = vadd.f32 %v1728, %v1745
    %1747 = vmatmul.bf16.gmra.mxu0 %v1498
    %v1748 = vpop.f32.mrf.mxu0
    %v1749 = vadd.f32 %v1731, %v1748
    %v1750 = vpop.f32.mrf.mxu0
    %1751 = vdwg.mxu0
    %1752 = vmatpush.bf16.msra.mxu0 %v1155
    %1753 = vmatpush.bf16.msra.mxu0 %v1140
    %1754 = vmatpush.bf16.msra.mxu0 %v1125
    %1755 = vmatpush.bf16.msra.mxu0 %v1110
    %1756 = vmatpush.bf16.msra.mxu0 %v1095
    %1757 = vmatpush.bf16.msra.mxu0 %v1080
    %1758 = vmatpush.bf16.msra.mxu0 %v1065
    %1759 = vmatpush.bf16.msra.mxu0 %v1050
    %1760 = vmatmul.bf16.gmra.mxu0 %v347
    %v1761 = vpop.f32.mrf.mxu0
    %v1762 = vadd.f32 %v315, %v1761
    %v1763 = vpop.f32.mrf.mxu0
    %v1764 = vadd.f32 %v315, %v1763
    %1765 = vmatmul.bf16.gmra.mxu0 %v349
    %v1766 = vpop.f32.mrf.mxu0
    %v1767 = vadd.f32 %v315, %v1766
    %v1768 = vpop.f32.mrf.mxu0
    %1769 = vdwg.mxu0
    %1770 = vmatpush.bf16.msra.mxu0 0
    %1771 = vmatpush.bf16.msra.mxu0 %v1260
    %1772 = vmatpush.bf16.msra.mxu0 %v1245
    %1773 = vmatpush.bf16.msra.mxu0 %v1230
    %1774 = vmatpush.bf16.msra.mxu0 %v1215
    %1775 = vmatpush.bf16.msra.mxu0 %v1200
    %1776 = vmatpush.bf16.msra.mxu0 %v1185
    %1777 = vmatpush.bf16.msra.mxu0 %v1170
    %1778 = vmatmul.bf16.gmra.mxu0 %v1495
    %v1779 = vpop.f32.mrf.mxu0
    %v1780 = vadd.f32 %v1762, %v1779
    %v1781 = vpop.f32.mrf.mxu0
    %v1782 = vadd.f32 %v1764, %v1781
    %1783 = vmatmul.bf16.gmra.mxu0 %v1498
    %v1784 = vpop.f32.mrf.mxu0
    %v1785 = vadd.f32 %v1767, %v1784
    %v1786 = vpop.f32.mrf.mxu0
    %1787 = vdwg.mxu0
    %1788 = vmatpush.bf16.msra.mxu0 %v1156
    %1789 = vmatpush.bf16.msra.mxu0 %v1141
    %1790 = vmatpush.bf16.msra.mxu0 %v1126
    %1791 = vmatpush.bf16.msra.mxu0 %v1111
    %1792 = vmatpush.bf16.msra.mxu0 %v1096
    %1793 = vmatpush.bf16.msra.mxu0 %v1081
    %1794 = vmatpush.bf16.msra.mxu0 %v1066
    %1795 = vmatpush.bf16.msra.mxu0 %v1051
    %1796 = vmatmul.bf16.gmra.mxu0 %v347
    %v1797 = vpop.f32.mrf.mxu0
    %v1798 = vadd.f32 %v316, %v1797
    %v1799 = vpop.f32.mrf.mxu0
    %v1800 = vadd.f32 %v316, %v1799
    %1801 = vmatmul.bf16.gmra.mxu0 %v349
    %v1802 = vpop.f32.mrf.mxu0
    %v1803 = vadd.f32 %v316, %v1802
    %v1804 = vpop.f32.mrf.mxu0
    %1805 = vdwg.mxu0
    %1806 = vmatpush.bf16.msra.mxu0 0
    %1807 = vmatpush.bf16.msra.mxu0 %v1261
    %1808 = vmatpush.bf16.msra.mxu0 %v1246
    %1809 = vmatpush.bf16.msra.mxu0 %v1231
    %1810 = vmatpush.bf16.msra.mxu0 %v1216
    %1811 = vmatpush.bf16.msra.mxu0 %v1201
    %1812 = vmatpush.bf16.msra.mxu0 %v1186
    %1813 = vmatpush.bf16.msra.mxu0 %v1171
    %1814 = vmatmul.bf16.gmra.mxu0 %v1495
    %v1815 = vpop.f32.mrf.mxu0
    %v1816 = vadd.f32 %v1798, %v1815
    %v1817 = vpop.f32.mrf.mxu0
    %v1818 = vadd.f32 %v1800, %v1817
    %1819 = vmatmul.bf16.gmra.mxu0 %v1498
    %v1820 = vpop.f32.mrf.mxu0
    %v1821 = vadd.f32 %v1803, %v1820
    %v1822 = vpop.f32.mrf.mxu0
    %1823 = vdwg.mxu0
    %1824 = vmatpush.bf16.msra.mxu0 %v1157
    %1825 = vmatpush.bf16.msra.mxu0 %v1142
    %1826 = vmatpush.bf16.msra.mxu0 %v1127
    %1827 = vmatpush.bf16.msra.mxu0 %v1112
    %1828 = vmatpush.bf16.msra.mxu0 %v1097
    %1829 = vmatpush.bf16.msra.mxu0 %v1082
    %1830 = vmatpush.bf16.msra.mxu0 %v1067
    %1831 = vmatpush.bf16.msra.mxu0 %v1052
    %1832 = vmatmul.bf16.gmra.mxu0 %v347
    %v1833 = vpop.f32.mrf.mxu0
    %v1834 = vadd.f32 %v317, %v1833
    %v1835 = vpop.f32.mrf.mxu0
    %v1836 = vadd.f32 %v317, %v1835
    %1837 = vmatmul.bf16.gmra.mxu0 %v349
    %v1838 = vpop.f32.mrf.mxu0
    %v1839 = vadd.f32 %v317, %v1838
    %v1840 = vpop.f32.mrf.mxu0
    %1841 = vdwg.mxu0
    %1842 = vmatpush.bf16.msra.mxu0 0
    %1843 = vmatpush.bf16.msra.mxu0 %v1262
    %1844 = vmatpush.bf16.msra.mxu0 %v1247
    %1845 = vmatpush.bf16.msra.mxu0 %v1232
    %1846 = vmatpush.bf16.msra.mxu0 %v1217
    %1847 = vmatpush.bf16.msra.mxu0 %v1202
    %1848 = vmatpush.bf16.msra.mxu0 %v1187
    %1849 = vmatpush.bf16.msra.mxu0 %v1172
    %1850 = vmatmul.bf16.gmra.mxu0 %v1495
    %v1851 = vpop.f32.mrf.mxu0
    %v1852 = vadd.f32 %v1834, %v1851
    %v1853 = vpop.f32.mrf.mxu0
    %v1854 = vadd.f32 %v1836, %v1853
    %1855 = vmatmul.bf16.gmra.mxu0 %v1498
    %v1856 = vpop.f32.mrf.mxu0
    %v1857 = vadd.f32 %v1839, %v1856
    %v1858 = vpop.f32.mrf.mxu0
    %1859 = vdwg.mxu0
    %1860 = vmatpush.bf16.msra.mxu0 %v1158
    %1861 = vmatpush.bf16.msra.mxu0 %v1143
    %1862 = vmatpush.bf16.msra.mxu0 %v1128
    %1863 = vmatpush.bf16.msra.mxu0 %v1113
    %1864 = vmatpush.bf16.msra.mxu0 %v1098
    %1865 = vmatpush.bf16.msra.mxu0 %v1083
    %1866 = vmatpush.bf16.msra.mxu0 %v1068
    %1867 = vmatpush.bf16.msra.mxu0 %v1053
    %1868 = vmatmul.bf16.gmra.mxu0 %v347
    %v1869 = vpop.f32.mrf.mxu0
    %v1870 = vadd.f32 %v318, %v1869
    %v1871 = vpop.f32.mrf.mxu0
    %v1872 = vadd.f32 %v318, %v1871
    %1873 = vmatmul.bf16.gmra.mxu0 %v349
    %v1874 = vpop.f32.mrf.mxu0
    %v1875 = vadd.f32 %v318, %v1874
    %v1876 = vpop.f32.mrf.mxu0
    %1877 = vdwg.mxu0
    %1878 = vmatpush.bf16.msra.mxu0 0
    %1879 = vmatpush.bf16.msra.mxu0 %v1263
    %1880 = vmatpush.bf16.msra.mxu0 %v1248
    %1881 = vmatpush.bf16.msra.mxu0 %v1233
    %1882 = vmatpush.bf16.msra.mxu0 %v1218
    %1883 = vmatpush.bf16.msra.mxu0 %v1203
    %1884 = vmatpush.bf16.msra.mxu0 %v1188
    %1885 = vmatpush.bf16.msra.mxu0 %v1173
    %1886 = vmatmul.bf16.gmra.mxu0 %v1495
    %v1887 = vpop.f32.mrf.mxu0
    %v1888 = vadd.f32 %v1870, %v1887
    %v1889 = vpop.f32.mrf.mxu0
    %v1890 = vadd.f32 %v1872, %v1889
    %1891 = vmatmul.bf16.gmra.mxu0 %v1498
    %v1892 = vpop.f32.mrf.mxu0
    %v1893 = vadd.f32 %v1875, %v1892
    %v1894 = vpop.f32.mrf.mxu0
    %1895 = vdwg.mxu0
    %1896 = vmatpush.bf16.msra.mxu0 %v1159
    %1897 = vmatpush.bf16.msra.mxu0 %v1144
    %1898 = vmatpush.bf16.msra.mxu0 %v1129
    %1899 = vmatpush.bf16.msra.mxu0 %v1114
    %1900 = vmatpush.bf16.msra.mxu0 %v1099
    %1901 = vmatpush.bf16.msra.mxu0 %v1084
    %1902 = vmatpush.bf16.msra.mxu0 %v1069
    %1903 = vmatpush.bf16.msra.mxu0 %v1054
    %1904 = vmatmul.bf16.gmra.mxu0 %v347
    %v1905 = vpop.f32.mrf.mxu0
    %v1906 = vadd.f32 %v319, %v1905
    %v1907 = vpop.f32.mrf.mxu0
    %v1908 = vadd.f32 %v319, %v1907
    %1909 = vmatmul.bf16.gmra.mxu0 %v349
    %v1910 = vpop.f32.mrf.mxu0
    %v1911 = vadd.f32 %v319, %v1910
    %v1912 = vpop.f32.mrf.mxu0
    %1913 = vdwg.mxu0
    %1914 = vmatpush.bf16.msra.mxu0 0
    %1915 = vmatpush.bf16.msra.mxu0 %v1264
    %1916 = vmatpush.bf16.msra.mxu0 %v1249
    %1917 = vmatpush.bf16.msra.mxu0 %v1234
    %1918 = vmatpush.bf16.msra.mxu0 %v1219
    %1919 = vmatpush.bf16.msra.mxu0 %v1204
    %1920 = vmatpush.bf16.msra.mxu0 %v1189
    %1921 = vmatpush.bf16.msra.mxu0 %v1174
    %1922 = vmatmul.bf16.gmra.mxu0 %v1495
    %v1923 = vpop.f32.mrf.mxu0
    %v1924 = vadd.f32 %v1906, %v1923
    %v1925 = vpop.f32.mrf.mxu0
    %v1926 = vadd.f32 %v1908, %v1925
    %1927 = vmatmul.bf16.gmra.mxu0 %v1498
    %v1928 = vpop.f32.mrf.mxu0
    %v1929 = vadd.f32 %v1911, %v1928
    %v1930 = vpop.f32.mrf.mxu0
    %1931 = vdwg.mxu0
    %1932 = vmatpush.bf16.msra.mxu0 %v1160
    %1933 = vmatpush.bf16.msra.mxu0 %v1145
    %1934 = vmatpush.bf16.msra.mxu0 %v1130
    %1935 = vmatpush.bf16.msra.mxu0 %v1115
    %1936 = vmatpush.bf16.msra.mxu0 %v1100
    %1937 = vmatpush.bf16.msra.mxu0 %v1085
    %1938 = vmatpush.bf16.msra.mxu0 %v1070
    %1939 = vmatpush.bf16.msra.mxu0 %v1055
    %1940 = vmatmul.bf16.gmra.mxu0 %v347
    %v1941 = vpop.f32.mrf.mxu0
    %v1942 = vadd.f32 %v320, %v1941
    %v1943 = vpop.f32.mrf.mxu0
    %v1944 = vadd.f32 %v320, %v1943
    %1945 = vmatmul.bf16.gmra.mxu0 %v349
    %v1946 = vpop.f32.mrf.mxu0
    %v1947 = vadd.f32 %v320, %v1946
    %v1948 = vpop.f32.mrf.mxu0
    %1949 = vdwg.mxu0
    %1950 = vmatpush.bf16.msra.mxu0 0
    %1951 = vmatpush.bf16.msra.mxu0 %v1265
    %1952 = vmatpush.bf16.msra.mxu0 %v1250
    %1953 = vmatpush.bf16.msra.mxu0 %v1235
    %1954 = vmatpush.bf16.msra.mxu0 %v1220
    %1955 = vmatpush.bf16.msra.mxu0 %v1205
    %1956 = vmatpush.bf16.msra.mxu0 %v1190
    %1957 = vmatpush.bf16.msra.mxu0 %v1175
    %1958 = vmatmul.bf16.gmra.mxu0 %v1495
    %v1959 = vpop.f32.mrf.mxu0
    %v1960 = vadd.f32 %v1942, %v1959
    %v1961 = vpop.f32.mrf.mxu0
    %v1962 = vadd.f32 %v1944, %v1961
    %1963 = vmatmul.bf16.gmra.mxu0 %v1498
    %v1964 = vpop.f32.mrf.mxu0
    %v1965 = vadd.f32 %v1947, %v1964
    %v1966 = vpop.f32.mrf.mxu0
    %1967 = vdwg.mxu0
    %1968 = vmatpush.bf16.msra.mxu0 %v1161
    %1969 = vmatpush.bf16.msra.mxu0 %v1146
    %1970 = vmatpush.bf16.msra.mxu0 %v1131
    %1971 = vmatpush.bf16.msra.mxu0 %v1116
    %1972 = vmatpush.bf16.msra.mxu0 %v1101
    %1973 = vmatpush.bf16.msra.mxu0 %v1086
    %1974 = vmatpush.bf16.msra.mxu0 %v1071
    %1975 = vmatpush.bf16.msra.mxu0 %v1056
    %1976 = vmatmul.bf16.gmra.mxu0 %v347
    %v1977 = vpop.f32.mrf.mxu0
    %v1978 = vadd.f32 %v321, %v1977
    %v1979 = vpop.f32.mrf.mxu0
    %v1980 = vadd.f32 %v321, %v1979
    %1981 = vmatmul.bf16.gmra.mxu0 %v349
    %v1982 = vpop.f32.mrf.mxu0
    %v1983 = vadd.f32 %v321, %v1982
    %v1984 = vpop.f32.mrf.mxu0
    %1985 = vdwg.mxu0
    %1986 = vmatpush.bf16.msra.mxu0 0
    %1987 = vmatpush.bf16.msra.mxu0 %v1266
    %1988 = vmatpush.bf16.msra.mxu0 %v1251
    %1989 = vmatpush.bf16.msra.mxu0 %v1236
    %1990 = vmatpush.bf16.msra.mxu0 %v1221
    %1991 = vmatpush.bf16.msra.mxu0 %v1206
    %1992 = vmatpush.bf16.msra.mxu0 %v1191
    %1993 = vmatpush.bf16.msra.mxu0 %v1176
    %1994 = vmatmul.bf16.gmra.mxu0 %v1495
    %v1995 = vpop.f32.mrf.mxu0
    %v1996 = vadd.f32 %v1978, %v1995
    %v1997 = vpop.f32.mrf.mxu0
    %v1998 = vadd.f32 %v1980, %v1997
    %1999 = vmatmul.bf16.gmra.mxu0 %v1498
    %v2000 = vpop.f32.mrf.mxu0
    %v2001 = vadd.f32 %v1983, %v2000
    %v2002 = vpop.f32.mrf.mxu0
    %2003 = vdwg.mxu0
    %2004 = vmatpush.bf16.msra.mxu0 %v1162
    %2005 = vmatpush.bf16.msra.mxu0 %v1147
    %2006 = vmatpush.bf16.msra.mxu0 %v1132
    %2007 = vmatpush.bf16.msra.mxu0 %v1117
    %2008 = vmatpush.bf16.msra.mxu0 %v1102
    %2009 = vmatpush.bf16.msra.mxu0 %v1087
    %2010 = vmatpush.bf16.msra.mxu0 %v1072
    %2011 = vmatpush.bf16.msra.mxu0 %v1057
    %2012 = vmatmul.bf16.gmra.mxu0 %v347
    %v2013 = vpop.f32.mrf.mxu0
    %v2014 = vadd.f32 %v322, %v2013
    %v2015 = vpop.f32.mrf.mxu0
    %v2016 = vadd.f32 %v322, %v2015
    %2017 = vmatmul.bf16.gmra.mxu0 %v349
    %v2018 = vpop.f32.mrf.mxu0
    %v2019 = vadd.f32 %v322, %v2018
    %v2020 = vpop.f32.mrf.mxu0
    %2021 = vdwg.mxu0
    %2022 = vmatpush.bf16.msra.mxu0 0
    %2023 = vmatpush.bf16.msra.mxu0 %v1267
    %2024 = vmatpush.bf16.msra.mxu0 %v1252
    %2025 = vmatpush.bf16.msra.mxu0 %v1237
    %2026 = vmatpush.bf16.msra.mxu0 %v1222
    %2027 = vmatpush.bf16.msra.mxu0 %v1207
    %2028 = vmatpush.bf16.msra.mxu0 %v1192
    %2029 = vmatpush.bf16.msra.mxu0 %v1177
    %2030 = vmatmul.bf16.gmra.mxu0 %v1495
    %v2031 = vpop.f32.mrf.mxu0
    %v2032 = vadd.f32 %v2014, %v2031
    %v2033 = vpop.f32.mrf.mxu0
    %v2034 = vadd.f32 %v2016, %v2033
    %2035 = vmatmul.bf16.gmra.mxu0 %v1498
    %v2036 = vpop.f32.mrf.mxu0
    %v2037 = vadd.f32 %v2019, %v2036
    %v2038 = vpop.f32.mrf.mxu0
    %2039 = vdwg.mxu0
    %v2040 = vmax.f32 %v1528, %v1564
    %v2041 = vmax.f32 %v1530, %v1566
    %v2042 = vmax.f32 %v1533, %v1569
    %v2043 = vmax.f32 %v2040, %v1600
    %v2044 = vmax.f32 %v2041, %v1602
    %v2045 = vmax.f32 %v2042, %v1605
    %v2046 = vmax.f32 %v2043, %v1636
    %v2047 = vmax.f32 %v2044, %v1638
    %v2048 = vmax.f32 %v2045, %v1641
    %v2049 = vmax.f32 %v2046, %v1672
    %v2050 = vmax.f32 %v2047, %v1674
    %v2051 = vmax.f32 %v2048, %v1677
    %v2052 = vmax.f32 %v2049, %v1708
    %v2053 = vmax.f32 %v2050, %v1710
    %v2054 = vmax.f32 %v2051, %v1713
    %v2055 = vmax.f32 %v2052, %v1744
    %v2056 = vmax.f32 %v2053, %v1746
    %v2057 = vmax.f32 %v2054, %v1749
    %v2058 = vmax.f32 %v2055, %v1780
    %v2059 = vmax.f32 %v2056, %v1782
    %v2060 = vmax.f32 %v2057, %v1785
    %v2061 = vmax.f32 %v2058, %v1816
    %v2062 = vmax.f32 %v2059, %v1818
    %v2063 = vmax.f32 %v2060, %v1821
    %v2064 = vmax.f32 %v2061, %v1852
    %v2065 = vmax.f32 %v2062, %v1854
    %v2066 = vmax.f32 %v2063, %v1857
    %v2067 = vmax.f32 %v2064, %v1888
    %v2068 = vmax.f32 %v2065, %v1890
    %v2069 = vmax.f32 %v2066, %v1893
    %v2070 = vmax.f32 %v2067, %v1924
    %v2071 = vmax.f32 %v2068, %v1926
    %v2072 = vmax.f32 %v2069, %v1929
    %v2073 = vmax.f32 %v2070, %v1960
    %v2074 = vmax.f32 %v2071, %v1962
    %v2075 = vmax.f32 %v2072, %v1965
    %v2076 = vmax.f32 %v2073, %v1996
    %v2077 = vmax.f32 %v2074, %v1998
    %v2078 = vmax.f32 %v2075, %v2001
    %v2079 = vmax.f32 %v2076, %v2032
    %v2080 = vmax.f32 %v2077, %v2034
    %v2081 = vmax.f32 %v2078, %v2037
    %2082 = vst [vmem:[#allocation8] sm:$0xff] %v2079
    %2083 = vst [vmem:[#allocation8 + $0x8] sm:$0xff] %v2080
    %2084 = vst [vmem:[#allocation8 + $0x10] sm:$0xff] %v2081
    // Predicated region
    $region26: #{tpu_custom_call.1} parent=1 // pred_check
      _
    $region27: #{tpu_custom_call.1} parent=1 // pred_check_branch
      %2086 = sbr.rel (0) target = $region29
    $region28: #{tpu_custom_call.1} parent=1 // pred_region
      %2088 = vsyncadd [#allocation4], 0
      %s2089 = sshll.u32 [#allocation8], 4
      %s2090 = int_to_ptr.vmem [resolvable:$true] %s2089
      %s2091 = sshll.u32 %s3, 4
      %s2092 = int_to_ptr.hbm [resolvable:$true] %s2091
      %2097 = dma.vmem_to_hbm [thread:$0]  %s2090, 384, %s2092, [#allocation4], 128, 128, 8
    $region29: #{tpu_custom_call.1} parent=1 // pred_fallthru
      _
    // Predicated region
    $region30: #{tpu_custom_call.1} parent=1 // pred_check
      _
    $region31: #{tpu_custom_call.1} parent=1 // pred_check_branch
      %2099 = sbr.rel (0) target = $region33
    $region32: #{tpu_custom_call.1} parent=1 // pred_region
      %2101 = dma.done [#allocation4], 384
    $region33: #{tpu_custom_call.1} parent=1 // pred_fallthru
      _
    %2102 = vsyncpa [#allocation3], 1
    %2103 = vsyncpa [#allocation6], 1
    %2104 = vsyncpa [#allocation4], 1

</llo_original>
